<compile_context>
chip_gen: v6e
topology: v6e:2x2x1
jax: 0.10.0
libtpu: 0.0.40
codegen_flags: <defaults>
</compile_context>

<pallas_src>
import math

import jax
import jax.numpy as jnp
from jax import lax
from jax.experimental import pallas as pl
from jax.experimental.pallas import tpu as pltpu

# ------------------------- model dimensions --------------------------------
B, S, E = 2, 16, 128        # batch, sequence, embed_size
H = 4                       # attention heads
DH = E // H                 # head dim
FWD = 4                     # forward_expansion
HID = FWD * E               # FFN hidden size
EPS = 1e-5                  # nn.LayerNorm default eps
R = B * S                   # flattened row count (batch folded into rows)


# ------------------------------ kernel --------------------------------------
def transformer_block_kernel(
    x_ref, bias_ref,
    wqkv_ref, bqkv_ref, wo_ref, bo_ref,
    g1_ref, be1_ref, g2_ref, be2_ref,
    w1_ref, bf1_ref, w2_ref, bf2_ref,
    o_ref,
):
    x = x_ref[...]                                  # (R, E) f32, batch flattened
    bias = bias_ref[...]                            # (S, S) additive mask bias

    # ---- fused QKV projection: one MXU pass over all B*S rows, N = 3E.
    # The 1/sqrt(E) score scale is already folded into Wq / bq at pack time.
    qkv = jnp.dot(x.astype(jnp.bfloat16), wqkv_ref[...],
                  preferred_element_type=jnp.float32) + bqkv_ref[0]
    q = qkv[:, 0 * E:1 * E].astype(jnp.bfloat16)    # (R, E) bf16
    k = qkv[:, 1 * E:2 * E].astype(jnp.bfloat16)
    v = qkv[:, 2 * E:3 * E].astype(jnp.bfloat16)

    # ---- multi-head attention: static unrolled loop over (batch, head).
    # bf16 operands / f32 accumulation on the MXU; softmax math in f32.
    ctx_rows = []
    for b in range(B):
        r0 = b * S
        head_ctx = []
        for h in range(H):
            c0 = h * DH
            qh = q[r0:r0 + S, c0:c0 + DH]           # (S, DH) bf16
            kh = k[r0:r0 + S, c0:c0 + DH]
            vh = v[r0:r0 + S, c0:c0 + DH]
            s = lax.dot_general(qh, kh, (((1,), (1,)), ((), ())),
                                preferred_element_type=jnp.float32)   # (S, S)
            s = s + bias
            s = s - jnp.max(s, axis=-1, keepdims=True)
            p = jnp.exp(s)
            p = p * pl.reciprocal(jnp.sum(p, axis=-1, keepdims=True), approx=True)
            head_ctx.append(jnp.dot(p.astype(jnp.bfloat16), vh,
                                    preferred_element_type=jnp.float32))  # (S, DH)
        ctx_rows.append(jnp.concatenate(head_ctx, axis=1))               # (S, E)
    ctx = jnp.concatenate(ctx_rows, axis=0).astype(jnp.bfloat16)         # (R, E)

    # ---- single output projection over all heads/batches (K = E = 128) ----
    attn = jnp.dot(ctx, wo_ref[...], preferred_element_type=jnp.float32) + bo_ref[0]

    # dropout: inference-mode identity
    # TODO(synk): training-mode dropout (p = config.dropout) not implemented.

    # ---- residual + LayerNorm 1 (f32) ----
    h1 = attn + x
    mu1 = jnp.mean(h1, axis=-1, keepdims=True)
    var1 = jnp.mean((h1 - mu1) ** 2, axis=-1, keepdims=True)
    n1 = (h1 - mu1) * lax.rsqrt(var1 + EPS) * g1_ref[0] + be1_ref[0]

    # ---- feed-forward: Linear -> exact GELU (erf) -> Linear (bf16 weights) ----
    f = jnp.dot(n1.astype(jnp.bfloat16), w1_ref[...],
                preferred_element_type=jnp.float32) + bf1_ref[0]
    f = 0.5 * f * (1.0 + lax.erf(f * jnp.float32(1.0 / math.sqrt(2.0))))
    f = jnp.dot(f.astype(jnp.bfloat16), w2_ref[...],
                preferred_element_type=jnp.float32) + bf2_ref[0]

    # ---- residual + LayerNorm 2 (f32) ----
    h2 = f + n1
    mu2 = jnp.mean(h2, axis=-1, keepdims=True)
    var2 = jnp.mean((h2 - mu2) ** 2, axis=-1, keepdims=True)
    o_ref[...] = (h2 - mu2) * lax.rsqrt(var2 + EPS) * g2_ref[0] + be2_ref[0]


# --------------------------- parameter packing --------------------------------
def pack_params(params):
    """Fuse wq|wk|wv -> (E, 3E), fold the 1/sqrt(E) score scale into Wq/bq,
    cast big matrices to bf16; small vectors stay f32."""
    (wq, bq, wk, bk, wv, bv, wo, bo, g1, be1, g2, be2, w1, bf1, w2, bf2) = params
    scale = jnp.float32(1.0 / math.sqrt(E))
    wqkv = jnp.concatenate([wq * scale, wk, wv], axis=1).astype(jnp.bfloat16)  # (E, 3E)
    bqkv = jnp.concatenate([bq * scale, bk, bv], axis=1)                       # (1, 3E) f32
    return (wqkv, bqkv,
            wo.astype(jnp.bfloat16), bo,
            g1, be1, g2, be2,
            w1.astype(jnp.bfloat16), bf1,
            w2.astype(jnp.bfloat16), bf2)


# ------------------------------ wrapper --------------------------------------
def transformer_block(x, mask, packed):
    # Additive mask bias computed once outside the kernel (XLA side).
    bias = jnp.where(mask == 0, jnp.float32(-1e20), jnp.float32(0.0))
    # Batch folded into rows; reshape outside the kernel is free in XLA.
    x2d = x.reshape(R, E)

    def full_spec(shape):
        nd = len(shape)
        return pl.BlockSpec(shape, lambda i, _nd=nd: (0,) * _nd)

    in_specs = [full_spec((R, E)), full_spec((S, S))] + [full_spec(p.shape) for p in packed]
    # TODO(synk): if scaled up (large S/E/HID), tile the FFN over HID with an
    # "arbitrary" K axis + VMEM accumulator, single-buffer the constant weight
    # BlockSpecs (pl.Buffered(1)), and raise vmem_limit_bytes with headroom so
    # the kernel still fits v7x's 64 MiB VMEM / 32 MiB default scoped limit.

    # Advisory cost estimate so XLA schedules/overlaps this small call well.
    flops = (
        2 * R * E * (3 * E)            # fused QKV projection
        + B * H * (2 * S * S * DH) * 2 # scores + P@V
        + 2 * R * E * E                # output projection
        + 2 * R * E * HID * 2          # FFN up + down
    )
    transc = B * H * S * S + R * HID + B * H * S + 2 * R   # exp, erf, recip, rsqrt
    weight_bytes = sum(int(p.size) * p.dtype.itemsize for p in packed)
    io_bytes = 2 * R * E * 4 + S * S * 4
    cost = pl.CostEstimate(flops=int(flops), transcendentals=int(transc),
                           bytes_accessed=int(weight_bytes + io_bytes))

    out2d = pl.pallas_call(
        transformer_block_kernel,
        out_shape=jax.ShapeDtypeStruct((R, E), jnp.float32),
        grid_spec=pltpu.PrefetchScalarGridSpec(
            num_scalar_prefetch=0,
            grid=(1,),                                   # single step: no per-batch loop
            in_specs=in_specs,
            out_specs=full_spec((R, E)),
        ),
        compiler_params=pltpu.CompilerParams(dimension_semantics=("arbitrary",)),
        cost_estimate=cost,
    )(x2d, bias, *packed)
    return out2d.reshape(B, S, E)


# --------------------------- pure-JAX reference -------------------------------
def reference_forward(x, mask, packed):
    """Mirrors the kernel's precision policy: bf16 weights / bf16 matmul inputs,
    f32 accumulation, f32 LayerNorm + softmax.  The 1/sqrt(E) score scale is
    already folded into the packed Wq/bq."""
    (wqkv, bqkv, wo, bo, g1, be1, g2, be2, w1, bf1, w2, bf2) = packed

    def mm(a, w):
        return jnp.dot(a.astype(jnp.bfloat16), w, preferred_element_type=jnp.float32)

    def layernorm(h, g, b):
        mu = jnp.mean(h, axis=-1, keepdims=True)
        var = jnp.mean((h - mu) ** 2, axis=-1, keepdims=True)
        return (h - mu) * lax.rsqrt(var + EPS) * g + b

    qkv = mm(x, wqkv) + bqkv
    q, k, v = qkv[..., :E], qkv[..., E:2 * E], qkv[..., 2 * E:]
    q = q.reshape(B, S, H, DH).transpose(0, 2, 1, 3).astype(jnp.bfloat16)
    k = k.reshape(B, S, H, DH).transpose(0, 2, 1, 3).astype(jnp.bfloat16)
    v = v.reshape(B, S, H, DH).transpose(0, 2, 1, 3).astype(jnp.bfloat16)
    scores = jnp.einsum("bhqd,bhkd->bhqk", q, k,
                        preferred_element_type=jnp.float32)
    scores = jnp.where(mask[None, None] == 0, -1e20, scores)
    p = jax.nn.softmax(scores, axis=-1)
    ctx = jnp.einsum("bhqk,bhkd->bhqd", p.astype(jnp.bfloat16), v,
                     preferred_element_type=jnp.float32)
    ctx = ctx.transpose(0, 2, 1, 3).reshape(B, S, E)
    attn = mm(ctx, wo) + bo
    n1 = layernorm(attn + x, g1, be1)
    f = mm(n1, w1) + bf1
    f = 0.5 * f * (1.0 + lax.erf(f / math.sqrt(2.0)))
    f = mm(f, w2) + bf2
    return layernorm(f + n1, g2, be2)


# ------------------------------- main ----------------------------------------
if __name__ == "__main__":
    key = jax.random.PRNGKey(0)
    keys = jax.random.split(key, 8)

    # Deterministic synthetic parameter init (no checkpoint loading).
    wq = 0.02 * jax.random.normal(keys[0], (E, E), jnp.float32)
    wk = 0.02 * jax.random.normal(keys[1], (E, E), jnp.float32)
    wv = 0.02 * jax.random.normal(keys[2], (E, E), jnp.float32)
    wo = 0.02 * jax.random.normal(keys[3], (E, E), jnp.float32)
    bq = jnp.zeros((1, E), jnp.float32)
    bk = jnp.zeros((1, E), jnp.float32)
    bv = jnp.zeros((1, E), jnp.float32)
    bo = jnp.zeros((1, E), jnp.float32)
    g1 = jnp.ones((1, E), jnp.float32)
    be1 = jnp.zeros((1, E), jnp.float32)
    g2 = jnp.ones((1, E), jnp.float32)
    be2 = jnp.zeros((1, E), jnp.float32)
    w1 = 0.02 * jax.random.normal(keys[4], (E, HID), jnp.float32)
    bf1 = jnp.zeros((1, HID), jnp.float32)
    w2 = 0.02 * jax.random.normal(keys[5], (HID, E), jnp.float32)
    bf2 = jnp.zeros((1, E), jnp.float32)

    params = (wq, bq, wk, bk, wv, bv, wo, bo, g1, be1, g2, be2, w1, bf1, w2, bf2)
    packed = pack_params(params)

    x = jax.random.normal(keys[6], (B, S, E), jnp.float32)
    mask = jnp.tril(jnp.ones((S, S), jnp.float32))   # causal mask: 1 = attend

    out = transformer_block(x, mask, packed)
    out = jax.block_until_ready(out)

    ref = reference_forward(x, mask, packed)
    assert out.shape == (B, S, E)
    # Tolerance covers bf16 matmul operands + approx softmax reciprocal.
    assert jnp.allclose(out, ref, atol=2e-3, rtol=2e-3), "mismatch vs reference"

    print("KERNEL_OK")
</pallas_src>

<mosaic_0001>
module attributes {stable_mosaic.version = 11 : i64} {
  func.func @transformer_block_kernel(%arg0: i32, %arg1: memref<32x128xf32, #tpu.memory_space<vmem>>, %arg2: memref<16x16xf32, #tpu.memory_space<vmem>>, %arg3: memref<128x384xbf16, #tpu.memory_space<vmem>>, %arg4: memref<1x384xf32, #tpu.memory_space<vmem>>, %arg5: memref<128x128xbf16, #tpu.memory_space<vmem>>, %arg6: memref<1x128xf32, #tpu.memory_space<vmem>>, %arg7: memref<1x128xf32, #tpu.memory_space<vmem>>, %arg8: memref<1x128xf32, #tpu.memory_space<vmem>>, %arg9: memref<1x128xf32, #tpu.memory_space<vmem>>, %arg10: memref<1x128xf32, #tpu.memory_space<vmem>>, %arg11: memref<128x512xbf16, #tpu.memory_space<vmem>>, %arg12: memref<1x512xf32, #tpu.memory_space<vmem>>, %arg13: memref<512x128xbf16, #tpu.memory_space<vmem>>, %arg14: memref<1x128xf32, #tpu.memory_space<vmem>>, %arg15: memref<32x128xf32, #tpu.memory_space<vmem>>) attributes {dimension_semantics = [#tpu.dimension_semantics<arbitrary>], iteration_bounds = array<i64: 1>, scalar_prefetch = 0 : i64, scratch_operands = 0 : i64, tpu.core_type = #tpu.core_type<tc>, window_params = [{pipeline_mode = #tpu.pipeline_mode<synchronous>, transform_indices = @transform_0, window_bounds = array<i64: 32, 128>}, {pipeline_mode = #tpu.pipeline_mode<synchronous>, transform_indices = @transform_1, window_bounds = array<i64: 16, 16>}, {pipeline_mode = #tpu.pipeline_mode<synchronous>, transform_indices = @transform_2, window_bounds = array<i64: 128, 384>}, {pipeline_mode = #tpu.pipeline_mode<synchronous>, transform_indices = @transform_3, window_bounds = array<i64: 1, 384>}, {pipeline_mode = #tpu.pipeline_mode<synchronous>, transform_indices = @transform_4, window_bounds = array<i64: 128, 128>}, {pipeline_mode = #tpu.pipeline_mode<synchronous>, transform_indices = @transform_5, window_bounds = array<i64: 1, 128>}, {pipeline_mode = #tpu.pipeline_mode<synchronous>, transform_indices = @transform_6, window_bounds = array<i64: 1, 128>}, {pipeline_mode = #tpu.pipeline_mode<synchronous>, transform_indices = @transform_7, window_bounds = array<i64: 1, 128>}, {pipeline_mode = #tpu.pipeline_mode<synchronous>, transform_indices = @transform_8, window_bounds = array<i64: 1, 128>}, {pipeline_mode = #tpu.pipeline_mode<synchronous>, transform_indices = @transform_9, window_bounds = array<i64: 1, 128>}, {pipeline_mode = #tpu.pipeline_mode<synchronous>, transform_indices = @transform_10, window_bounds = array<i64: 128, 512>}, {pipeline_mode = #tpu.pipeline_mode<synchronous>, transform_indices = @transform_11, window_bounds = array<i64: 1, 512>}, {pipeline_mode = #tpu.pipeline_mode<synchronous>, transform_indices = @transform_12, window_bounds = array<i64: 512, 128>}, {pipeline_mode = #tpu.pipeline_mode<synchronous>, transform_indices = @transform_13, window_bounds = array<i64: 1, 128>}, {pipeline_mode = #tpu.pipeline_mode<synchronous>, transform_indices = @transform_14, window_bounds = array<i64: 32, 128>}]} {
    %c0 = arith.constant 0 : index
    %c0_0 = arith.constant 0 : index
    %0 = vector.load %arg1[%c0, %c0_0] : memref<32x128xf32, #tpu.memory_space<vmem>>, vector<32x128xf32>
    %c0_1 = arith.constant 0 : index
    %c0_2 = arith.constant 0 : index
    %1 = vector.load %arg2[%c0_1, %c0_2] : memref<16x16xf32, #tpu.memory_space<vmem>>, vector<16x16xf32>
    %2 = arith.truncf %0 : vector<32x128xf32> to vector<32x128xbf16>
    %c0_3 = arith.constant 0 : index
    %c0_4 = arith.constant 0 : index
    %3 = vector.load %arg3[%c0_3, %c0_4] : memref<128x384xbf16, #tpu.memory_space<vmem>>, vector<128x384xbf16>
    %cst = arith.constant dense<0.000000e+00> : vector<32x384xf32>
    %4 = tpu.matmul %2, %3, %cst {dimension_numbers = #tpu.dot_dimension_numbers<[1], [0], [0], [1], [0, 0, 1, 1], [], []>} : vector<32x128xbf16>, vector<128x384xbf16>, vector<32x384xf32> -> vector<32x384xf32>
    %c0_5 = arith.constant 0 : index
    %c0_6 = arith.constant 0 : index
    %5 = vector.load %arg4[%c0_5, %c0_6] : memref<1x384xf32, #tpu.memory_space<vmem>>, vector<1x384xf32>
    %6 = vector.shape_cast %5 : vector<1x384xf32> to vector<384xf32>
    %7 = vector.shape_cast %6 : vector<384xf32> to vector<1x384xf32>
    %8 = vector.broadcast %7 : vector<1x384xf32> to vector<32x384xf32>
    %9 = arith.addf %4, %8 : vector<32x384xf32>
    %10 = vector.extract_strided_slice %9 {offsets = [0, 0], sizes = [32, 128], strides = [1, 1]} : vector<32x384xf32> to vector<32x128xf32>
    %11 = arith.truncf %10 : vector<32x128xf32> to vector<32x128xbf16>
    %12 = vector.extract_strided_slice %9 {offsets = [0, 128], sizes = [32, 128], strides = [1, 1]} : vector<32x384xf32> to vector<32x128xf32>
    %13 = arith.truncf %12 : vector<32x128xf32> to vector<32x128xbf16>
    %14 = vector.extract_strided_slice %9 {offsets = [0, 256], sizes = [32, 128], strides = [1, 1]} : vector<32x384xf32> to vector<32x128xf32>
    %15 = arith.truncf %14 : vector<32x128xf32> to vector<32x128xbf16>
    %16 = vector.extract_strided_slice %11 {offsets = [0, 0], sizes = [16, 32], strides = [1, 1]} : vector<32x128xbf16> to vector<16x32xbf16>
    %17 = vector.extract_strided_slice %13 {offsets = [0, 0], sizes = [16, 32], strides = [1, 1]} : vector<32x128xbf16> to vector<16x32xbf16>
    %18 = vector.extract_strided_slice %15 {offsets = [0, 0], sizes = [16, 32], strides = [1, 1]} : vector<32x128xbf16> to vector<16x32xbf16>
    %cst_7 = arith.constant dense<0.000000e+00> : vector<16x16xf32>
    %19 = tpu.matmul %16, %17, %cst_7 {dimension_numbers = #tpu.dot_dimension_numbers<[1], [1], [0], [0], [0, 0, 1, 0], [], []>} : vector<16x32xbf16>, vector<16x32xbf16>, vector<16x16xf32> -> vector<16x16xf32>
    %20 = arith.addf %19, %1 : vector<16x16xf32>
    %cst_8 = arith.constant dense<0xFF800000> : vector<16xf32>
    %21 = vector.multi_reduction <maximumf>, %20, %cst_8 [1] : vector<16x16xf32> to vector<16xf32>
    %22 = vector.shape_cast %21 : vector<16xf32> to vector<16x1xf32>
    %23 = vector.broadcast %22 : vector<16x1xf32> to vector<16x16xf32>
    %24 = arith.subf %20, %23 : vector<16x16xf32>
    %25 = math.exp %24 : vector<16x16xf32>
    %cst_9 = arith.constant dense<0.000000e+00> : vector<16xf32>
    %26 = vector.multi_reduction <add>, %25, %cst_9 [1] : vector<16x16xf32> to vector<16xf32>
    %27 = vector.shape_cast %26 : vector<16xf32> to vector<16x1xf32>
    %28 = tpu.reciprocal %27 {approx = true} : vector<16x1xf32> -> vector<16x1xf32>
    %29 = vector.broadcast %28 : vector<16x1xf32> to vector<16x16xf32>
    %30 = arith.mulf %25, %29 : vector<16x16xf32>
    %31 = arith.truncf %30 : vector<16x16xf32> to vector<16x16xbf16>
    %cst_10 = arith.constant dense<0.000000e+00> : vector<16x32xf32>
    %32 = tpu.matmul %31, %18, %cst_10 {dimension_numbers = #tpu.dot_dimension_numbers<[1], [0], [0], [1], [0, 0, 1, 1], [], []>} : vector<16x16xbf16>, vector<16x32xbf16>, vector<16x32xf32> -> vector<16x32xf32>
    %33 = vector.extract_strided_slice %11 {offsets = [0, 32], sizes = [16, 32], strides = [1, 1]} : vector<32x128xbf16> to vector<16x32xbf16>
    %34 = vector.extract_strided_slice %13 {offsets = [0, 32], sizes = [16, 32], strides = [1, 1]} : vector<32x128xbf16> to vector<16x32xbf16>
    %35 = vector.extract_strided_slice %15 {offsets = [0, 32], sizes = [16, 32], strides = [1, 1]} : vector<32x128xbf16> to vector<16x32xbf16>
    %cst_11 = arith.constant dense<0.000000e+00> : vector<16x16xf32>
    %36 = tpu.matmul %33, %34, %cst_11 {dimension_numbers = #tpu.dot_dimension_numbers<[1], [1], [0], [0], [0, 0, 1, 0], [], []>} : vector<16x32xbf16>, vector<16x32xbf16>, vector<16x16xf32> -> vector<16x16xf32>
    %37 = arith.addf %36, %1 : vector<16x16xf32>
    %cst_12 = arith.constant dense<0xFF800000> : vector<16xf32>
    %38 = vector.multi_reduction <maximumf>, %37, %cst_12 [1] : vector<16x16xf32> to vector<16xf32>
    %39 = vector.shape_cast %38 : vector<16xf32> to vector<16x1xf32>
    %40 = vector.broadcast %39 : vector<16x1xf32> to vector<16x16xf32>
    %41 = arith.subf %37, %40 : vector<16x16xf32>
    %42 = math.exp %41 : vector<16x16xf32>
    %cst_13 = arith.constant dense<0.000000e+00> : vector<16xf32>
    %43 = vector.multi_reduction <add>, %42, %cst_13 [1] : vector<16x16xf32> to vector<16xf32>
    %44 = vector.shape_cast %43 : vector<16xf32> to vector<16x1xf32>
    %45 = tpu.reciprocal %44 {approx = true} : vector<16x1xf32> -> vector<16x1xf32>
    %46 = vector.broadcast %45 : vector<16x1xf32> to vector<16x16xf32>
    %47 = arith.mulf %42, %46 : vector<16x16xf32>
    %48 = arith.truncf %47 : vector<16x16xf32> to vector<16x16xbf16>
    %cst_14 = arith.constant dense<0.000000e+00> : vector<16x32xf32>
    %49 = tpu.matmul %48, %35, %cst_14 {dimension_numbers = #tpu.dot_dimension_numbers<[1], [0], [0], [1], [0, 0, 1, 1], [], []>} : vector<16x16xbf16>, vector<16x32xbf16>, vector<16x32xf32> -> vector<16x32xf32>
    %50 = vector.extract_strided_slice %11 {offsets = [0, 64], sizes = [16, 32], strides = [1, 1]} : vector<32x128xbf16> to vector<16x32xbf16>
    %51 = vector.extract_strided_slice %13 {offsets = [0, 64], sizes = [16, 32], strides = [1, 1]} : vector<32x128xbf16> to vector<16x32xbf16>
    %52 = vector.extract_strided_slice %15 {offsets = [0, 64], sizes = [16, 32], strides = [1, 1]} : vector<32x128xbf16> to vector<16x32xbf16>
    %cst_15 = arith.constant dense<0.000000e+00> : vector<16x16xf32>
    %53 = tpu.matmul %50, %51, %cst_15 {dimension_numbers = #tpu.dot_dimension_numbers<[1], [1], [0], [0], [0, 0, 1, 0], [], []>} : vector<16x32xbf16>, vector<16x32xbf16>, vector<16x16xf32> -> vector<16x16xf32>
    %54 = arith.addf %53, %1 : vector<16x16xf32>
    %cst_16 = arith.constant dense<0xFF800000> : vector<16xf32>
    %55 = vector.multi_reduction <maximumf>, %54, %cst_16 [1] : vector<16x16xf32> to vector<16xf32>
    %56 = vector.shape_cast %55 : vector<16xf32> to vector<16x1xf32>
    %57 = vector.broadcast %56 : vector<16x1xf32> to vector<16x16xf32>
    %58 = arith.subf %54, %57 : vector<16x16xf32>
    %59 = math.exp %58 : vector<16x16xf32>
    %cst_17 = arith.constant dense<0.000000e+00> : vector<16xf32>
    %60 = vector.multi_reduction <add>, %59, %cst_17 [1] : vector<16x16xf32> to vector<16xf32>
    %61 = vector.shape_cast %60 : vector<16xf32> to vector<16x1xf32>
    %62 = tpu.reciprocal %61 {approx = true} : vector<16x1xf32> -> vector<16x1xf32>
    %63 = vector.broadcast %62 : vector<16x1xf32> to vector<16x16xf32>
    %64 = arith.mulf %59, %63 : vector<16x16xf32>
    %65 = arith.truncf %64 : vector<16x16xf32> to vector<16x16xbf16>
    %cst_18 = arith.constant dense<0.000000e+00> : vector<16x32xf32>
    %66 = tpu.matmul %65, %52, %cst_18 {dimension_numbers = #tpu.dot_dimension_numbers<[1], [0], [0], [1], [0, 0, 1, 1], [], []>} : vector<16x16xbf16>, vector<16x32xbf16>, vector<16x32xf32> -> vector<16x32xf32>
    %67 = vector.extract_strided_slice %11 {offsets = [0, 96], sizes = [16, 32], strides = [1, 1]} : vector<32x128xbf16> to vector<16x32xbf16>
    %68 = vector.extract_strided_slice %13 {offsets = [0, 96], sizes = [16, 32], strides = [1, 1]} : vector<32x128xbf16> to vector<16x32xbf16>
    %69 = vector.extract_strided_slice %15 {offsets = [0, 96], sizes = [16, 32], strides = [1, 1]} : vector<32x128xbf16> to vector<16x32xbf16>
    %cst_19 = arith.constant dense<0.000000e+00> : vector<16x16xf32>
    %70 = tpu.matmul %67, %68, %cst_19 {dimension_numbers = #tpu.dot_dimension_numbers<[1], [1], [0], [0], [0, 0, 1, 0], [], []>} : vector<16x32xbf16>, vector<16x32xbf16>, vector<16x16xf32> -> vector<16x16xf32>
    %71 = arith.addf %70, %1 : vector<16x16xf32>
    %cst_20 = arith.constant dense<0xFF800000> : vector<16xf32>
    %72 = vector.multi_reduction <maximumf>, %71, %cst_20 [1] : vector<16x16xf32> to vector<16xf32>
    %73 = vector.shape_cast %72 : vector<16xf32> to vector<16x1xf32>
    %74 = vector.broadcast %73 : vector<16x1xf32> to vector<16x16xf32>
    %75 = arith.subf %71, %74 : vector<16x16xf32>
    %76 = math.exp %75 : vector<16x16xf32>
    %cst_21 = arith.constant dense<0.000000e+00> : vector<16xf32>
    %77 = vector.multi_reduction <add>, %76, %cst_21 [1] : vector<16x16xf32> to vector<16xf32>
    %78 = vector.shape_cast %77 : vector<16xf32> to vector<16x1xf32>
    %79 = tpu.reciprocal %78 {approx = true} : vector<16x1xf32> -> vector<16x1xf32>
    %80 = vector.broadcast %79 : vector<16x1xf32> to vector<16x16xf32>
    %81 = arith.mulf %76, %80 : vector<16x16xf32>
    %82 = arith.truncf %81 : vector<16x16xf32> to vector<16x16xbf16>
    %cst_22 = arith.constant dense<0.000000e+00> : vector<16x32xf32>
    %83 = tpu.matmul %82, %69, %cst_22 {dimension_numbers = #tpu.dot_dimension_numbers<[1], [0], [0], [1], [0, 0, 1, 1], [], []>} : vector<16x16xbf16>, vector<16x32xbf16>, vector<16x32xf32> -> vector<16x32xf32>
    %84 = tpu.concatenate %32, %49, %66, %83 in 1 : vector<16x32xf32>, vector<16x32xf32>, vector<16x32xf32>, vector<16x32xf32> -> vector<16x128xf32>
    %85 = vector.extract_strided_slice %11 {offsets = [16, 0], sizes = [16, 32], strides = [1, 1]} : vector<32x128xbf16> to vector<16x32xbf16>
    %86 = vector.extract_strided_slice %13 {offsets = [16, 0], sizes = [16, 32], strides = [1, 1]} : vector<32x128xbf16> to vector<16x32xbf16>
    %87 = vector.extract_strided_slice %15 {offsets = [16, 0], sizes = [16, 32], strides = [1, 1]} : vector<32x128xbf16> to vector<16x32xbf16>
    %cst_23 = arith.constant dense<0.000000e+00> : vector<16x16xf32>
    %88 = tpu.matmul %85, %86, %cst_23 {dimension_numbers = #tpu.dot_dimension_numbers<[1], [1], [0], [0], [0, 0, 1, 0], [], []>} : vector<16x32xbf16>, vector<16x32xbf16>, vector<16x16xf32> -> vector<16x16xf32>
    %89 = arith.addf %88, %1 : vector<16x16xf32>
    %cst_24 = arith.constant dense<0xFF800000> : vector<16xf32>
    %90 = vector.multi_reduction <maximumf>, %89, %cst_24 [1] : vector<16x16xf32> to vector<16xf32>
    %91 = vector.shape_cast %90 : vector<16xf32> to vector<16x1xf32>
    %92 = vector.broadcast %91 : vector<16x1xf32> to vector<16x16xf32>
    %93 = arith.subf %89, %92 : vector<16x16xf32>
    %94 = math.exp %93 : vector<16x16xf32>
    %cst_25 = arith.constant dense<0.000000e+00> : vector<16xf32>
    %95 = vector.multi_reduction <add>, %94, %cst_25 [1] : vector<16x16xf32> to vector<16xf32>
    %96 = vector.shape_cast %95 : vector<16xf32> to vector<16x1xf32>
    %97 = tpu.reciprocal %96 {approx = true} : vector<16x1xf32> -> vector<16x1xf32>
    %98 = vector.broadcast %97 : vector<16x1xf32> to vector<16x16xf32>
    %99 = arith.mulf %94, %98 : vector<16x16xf32>
    %100 = arith.truncf %99 : vector<16x16xf32> to vector<16x16xbf16>
    %cst_26 = arith.constant dense<0.000000e+00> : vector<16x32xf32>
    %101 = tpu.matmul %100, %87, %cst_26 {dimension_numbers = #tpu.dot_dimension_numbers<[1], [0], [0], [1], [0, 0, 1, 1], [], []>} : vector<16x16xbf16>, vector<16x32xbf16>, vector<16x32xf32> -> vector<16x32xf32>
    %102 = vector.extract_strided_slice %11 {offsets = [16, 32], sizes = [16, 32], strides = [1, 1]} : vector<32x128xbf16> to vector<16x32xbf16>
    %103 = vector.extract_strided_slice %13 {offsets = [16, 32], sizes = [16, 32], strides = [1, 1]} : vector<32x128xbf16> to vector<16x32xbf16>
    %104 = vector.extract_strided_slice %15 {offsets = [16, 32], sizes = [16, 32], strides = [1, 1]} : vector<32x128xbf16> to vector<16x32xbf16>
    %cst_27 = arith.constant dense<0.000000e+00> : vector<16x16xf32>
    %105 = tpu.matmul %102, %103, %cst_27 {dimension_numbers = #tpu.dot_dimension_numbers<[1], [1], [0], [0], [0, 0, 1, 0], [], []>} : vector<16x32xbf16>, vector<16x32xbf16>, vector<16x16xf32> -> vector<16x16xf32>
    %106 = arith.addf %105, %1 : vector<16x16xf32>
    %cst_28 = arith.constant dense<0xFF800000> : vector<16xf32>
    %107 = vector.multi_reduction <maximumf>, %106, %cst_28 [1] : vector<16x16xf32> to vector<16xf32>
    %108 = vector.shape_cast %107 : vector<16xf32> to vector<16x1xf32>
    %109 = vector.broadcast %108 : vector<16x1xf32> to vector<16x16xf32>
    %110 = arith.subf %106, %109 : vector<16x16xf32>
    %111 = math.exp %110 : vector<16x16xf32>
    %cst_29 = arith.constant dense<0.000000e+00> : vector<16xf32>
    %112 = vector.multi_reduction <add>, %111, %cst_29 [1] : vector<16x16xf32> to vector<16xf32>
    %113 = vector.shape_cast %112 : vector<16xf32> to vector<16x1xf32>
    %114 = tpu.reciprocal %113 {approx = true} : vector<16x1xf32> -> vector<16x1xf32>
    %115 = vector.broadcast %114 : vector<16x1xf32> to vector<16x16xf32>
    %116 = arith.mulf %111, %115 : vector<16x16xf32>
    %117 = arith.truncf %116 : vector<16x16xf32> to vector<16x16xbf16>
    %cst_30 = arith.constant dense<0.000000e+00> : vector<16x32xf32>
    %118 = tpu.matmul %117, %104, %cst_30 {dimension_numbers = #tpu.dot_dimension_numbers<[1], [0], [0], [1], [0, 0, 1, 1], [], []>} : vector<16x16xbf16>, vector<16x32xbf16>, vector<16x32xf32> -> vector<16x32xf32>
    %119 = vector.extract_strided_slice %11 {offsets = [16, 64], sizes = [16, 32], strides = [1, 1]} : vector<32x128xbf16> to vector<16x32xbf16>
    %120 = vector.extract_strided_slice %13 {offsets = [16, 64], sizes = [16, 32], strides = [1, 1]} : vector<32x128xbf16> to vector<16x32xbf16>
    %121 = vector.extract_strided_slice %15 {offsets = [16, 64], sizes = [16, 32], strides = [1, 1]} : vector<32x128xbf16> to vector<16x32xbf16>
    %cst_31 = arith.constant dense<0.000000e+00> : vector<16x16xf32>
    %122 = tpu.matmul %119, %120, %cst_31 {dimension_numbers = #tpu.dot_dimension_numbers<[1], [1], [0], [0], [0, 0, 1, 0], [], []>} : vector<16x32xbf16>, vector<16x32xbf16>, vector<16x16xf32> -> vector<16x16xf32>
    %123 = arith.addf %122, %1 : vector<16x16xf32>
    %cst_32 = arith.constant dense<0xFF800000> : vector<16xf32>
    %124 = vector.multi_reduction <maximumf>, %123, %cst_32 [1] : vector<16x16xf32> to vector<16xf32>
    %125 = vector.shape_cast %124 : vector<16xf32> to vector<16x1xf32>
    %126 = vector.broadcast %125 : vector<16x1xf32> to vector<16x16xf32>
    %127 = arith.subf %123, %126 : vector<16x16xf32>
    %128 = math.exp %127 : vector<16x16xf32>
    %cst_33 = arith.constant dense<0.000000e+00> : vector<16xf32>
    %129 = vector.multi_reduction <add>, %128, %cst_33 [1] : vector<16x16xf32> to vector<16xf32>
    %130 = vector.shape_cast %129 : vector<16xf32> to vector<16x1xf32>
    %131 = tpu.reciprocal %130 {approx = true} : vector<16x1xf32> -> vector<16x1xf32>
    %132 = vector.broadcast %131 : vector<16x1xf32> to vector<16x16xf32>
    %133 = arith.mulf %128, %132 : vector<16x16xf32>
    %134 = arith.truncf %133 : vector<16x16xf32> to vector<16x16xbf16>
    %cst_34 = arith.constant dense<0.000000e+00> : vector<16x32xf32>
    %135 = tpu.matmul %134, %121, %cst_34 {dimension_numbers = #tpu.dot_dimension_numbers<[1], [0], [0], [1], [0, 0, 1, 1], [], []>} : vector<16x16xbf16>, vector<16x32xbf16>, vector<16x32xf32> -> vector<16x32xf32>
    %136 = vector.extract_strided_slice %11 {offsets = [16, 96], sizes = [16, 32], strides = [1, 1]} : vector<32x128xbf16> to vector<16x32xbf16>
    %137 = vector.extract_strided_slice %13 {offsets = [16, 96], sizes = [16, 32], strides = [1, 1]} : vector<32x128xbf16> to vector<16x32xbf16>
    %138 = vector.extract_strided_slice %15 {offsets = [16, 96], sizes = [16, 32], strides = [1, 1]} : vector<32x128xbf16> to vector<16x32xbf16>
    %cst_35 = arith.constant dense<0.000000e+00> : vector<16x16xf32>
    %139 = tpu.matmul %136, %137, %cst_35 {dimension_numbers = #tpu.dot_dimension_numbers<[1], [1], [0], [0], [0, 0, 1, 0], [], []>} : vector<16x32xbf16>, vector<16x32xbf16>, vector<16x16xf32> -> vector<16x16xf32>
    %140 = arith.addf %139, %1 : vector<16x16xf32>
    %cst_36 = arith.constant dense<0xFF800000> : vector<16xf32>
    %141 = vector.multi_reduction <maximumf>, %140, %cst_36 [1] : vector<16x16xf32> to vector<16xf32>
    %142 = vector.shape_cast %141 : vector<16xf32> to vector<16x1xf32>
    %143 = vector.broadcast %142 : vector<16x1xf32> to vector<16x16xf32>
    %144 = arith.subf %140, %143 : vector<16x16xf32>
    %145 = math.exp %144 : vector<16x16xf32>
    %cst_37 = arith.constant dense<0.000000e+00> : vector<16xf32>
    %146 = vector.multi_reduction <add>, %145, %cst_37 [1] : vector<16x16xf32> to vector<16xf32>
    %147 = vector.shape_cast %146 : vector<16xf32> to vector<16x1xf32>
    %148 = tpu.reciprocal %147 {approx = true} : vector<16x1xf32> -> vector<16x1xf32>
    %149 = vector.broadcast %148 : vector<16x1xf32> to vector<16x16xf32>
    %150 = arith.mulf %145, %149 : vector<16x16xf32>
    %151 = arith.truncf %150 : vector<16x16xf32> to vector<16x16xbf16>
    %cst_38 = arith.constant dense<0.000000e+00> : vector<16x32xf32>
    %152 = tpu.matmul %151, %138, %cst_38 {dimension_numbers = #tpu.dot_dimension_numbers<[1], [0], [0], [1], [0, 0, 1, 1], [], []>} : vector<16x16xbf16>, vector<16x32xbf16>, vector<16x32xf32> -> vector<16x32xf32>
    %153 = tpu.concatenate %101, %118, %135, %152 in 1 : vector<16x32xf32>, vector<16x32xf32>, vector<16x32xf32>, vector<16x32xf32> -> vector<16x128xf32>
    %154 = tpu.concatenate %84, %153 in 0 : vector<16x128xf32>, vector<16x128xf32> -> vector<32x128xf32>
    %155 = arith.truncf %154 : vector<32x128xf32> to vector<32x128xbf16>
    %c0_39 = arith.constant 0 : index
    %c0_40 = arith.constant 0 : index
    %156 = vector.load %arg5[%c0_39, %c0_40] : memref<128x128xbf16, #tpu.memory_space<vmem>>, vector<128x128xbf16>
    %cst_41 = arith.constant dense<0.000000e+00> : vector<32x128xf32>
    %157 = tpu.matmul %155, %156, %cst_41 {dimension_numbers = #tpu.dot_dimension_numbers<[1], [0], [0], [1], [0, 0, 1, 1], [], []>} : vector<32x128xbf16>, vector<128x128xbf16>, vector<32x128xf32> -> vector<32x128xf32>
    %c0_42 = arith.constant 0 : index
    %c0_43 = arith.constant 0 : index
    %158 = vector.load %arg6[%c0_42, %c0_43] : memref<1x128xf32, #tpu.memory_space<vmem>>, vector<1x128xf32>
    %159 = vector.shape_cast %158 : vector<1x128xf32> to vector<128xf32>
    %160 = vector.shape_cast %159 : vector<128xf32> to vector<1x128xf32>
    %161 = vector.broadcast %160 : vector<1x128xf32> to vector<32x128xf32>
    %162 = arith.addf %157, %161 : vector<32x128xf32>
    %163 = arith.addf %162, %0 : vector<32x128xf32>
    %cst_44 = arith.constant dense<0.000000e+00> : vector<32xf32>
    %164 = vector.multi_reduction <add>, %163, %cst_44 [1] : vector<32x128xf32> to vector<32xf32>
    %165 = vector.shape_cast %164 : vector<32xf32> to vector<32x1xf32>
    %cst_45 = arith.constant 1.280000e+02 : f32
    %166 = vector.broadcast %cst_45 : f32 to vector<32x1xf32>
    %167 = arith.divf %165, %166 : vector<32x1xf32>
    %168 = vector.broadcast %167 : vector<32x1xf32> to vector<32x128xf32>
    %169 = arith.subf %163, %168 : vector<32x128xf32>
    %170 = arith.mulf %169, %169 : vector<32x128xf32>
    %cst_46 = arith.constant dense<0.000000e+00> : vector<32xf32>
    %171 = vector.multi_reduction <add>, %170, %cst_46 [1] : vector<32x128xf32> to vector<32xf32>
    %172 = vector.shape_cast %171 : vector<32xf32> to vector<32x1xf32>
    %cst_47 = arith.constant 1.280000e+02 : f32
    %173 = vector.broadcast %cst_47 : f32 to vector<32x1xf32>
    %174 = arith.divf %172, %173 : vector<32x1xf32>
    %175 = vector.broadcast %167 : vector<32x1xf32> to vector<32x128xf32>
    %176 = arith.subf %163, %175 : vector<32x128xf32>
    %cst_48 = arith.constant 9.99999974E-6 : f32
    %177 = vector.broadcast %cst_48 : f32 to vector<32x1xf32>
    %178 = arith.addf %174, %177 : vector<32x1xf32>
    %179 = math.rsqrt %178 : vector<32x1xf32>
    %180 = vector.broadcast %179 : vector<32x1xf32> to vector<32x128xf32>
    %181 = arith.mulf %176, %180 : vector<32x128xf32>
    %c0_49 = arith.constant 0 : index
    %c0_50 = arith.constant 0 : index
    %182 = vector.load %arg7[%c0_49, %c0_50] : memref<1x128xf32, #tpu.memory_space<vmem>>, vector<1x128xf32>
    %183 = vector.shape_cast %182 : vector<1x128xf32> to vector<128xf32>
    %184 = vector.shape_cast %183 : vector<128xf32> to vector<1x128xf32>
    %185 = vector.broadcast %184 : vector<1x128xf32> to vector<32x128xf32>
    %186 = arith.mulf %181, %185 : vector<32x128xf32>
    %c0_51 = arith.constant 0 : index
    %c0_52 = arith.constant 0 : index
    %187 = vector.load %arg8[%c0_51, %c0_52] : memref<1x128xf32, #tpu.memory_space<vmem>>, vector<1x128xf32>
    %188 = vector.shape_cast %187 : vector<1x128xf32> to vector<128xf32>
    %189 = vector.shape_cast %188 : vector<128xf32> to vector<1x128xf32>
    %190 = vector.broadcast %189 : vector<1x128xf32> to vector<32x128xf32>
    %191 = arith.addf %186, %190 : vector<32x128xf32>
    %192 = arith.truncf %191 : vector<32x128xf32> to vector<32x128xbf16>
    %c0_53 = arith.constant 0 : index
    %c0_54 = arith.constant 0 : index
    %193 = vector.load %arg11[%c0_53, %c0_54] : memref<128x512xbf16, #tpu.memory_space<vmem>>, vector<128x512xbf16>
    %cst_55 = arith.constant dense<0.000000e+00> : vector<32x512xf32>
    %194 = tpu.matmul %192, %193, %cst_55 {dimension_numbers = #tpu.dot_dimension_numbers<[1], [0], [0], [1], [0, 0, 1, 1], [], []>} : vector<32x128xbf16>, vector<128x512xbf16>, vector<32x512xf32> -> vector<32x512xf32>
    %c0_56 = arith.constant 0 : index
    %c0_57 = arith.constant 0 : index
    %195 = vector.load %arg12[%c0_56, %c0_57] : memref<1x512xf32, #tpu.memory_space<vmem>>, vector<1x512xf32>
    %196 = vector.shape_cast %195 : vector<1x512xf32> to vector<512xf32>
    %197 = vector.shape_cast %196 : vector<512xf32> to vector<1x512xf32>
    %198 = vector.broadcast %197 : vector<1x512xf32> to vector<32x512xf32>
    %199 = arith.addf %194, %198 : vector<32x512xf32>
    %cst_58 = arith.constant 5.000000e-01 : f32
    %200 = vector.broadcast %cst_58 : f32 to vector<32x512xf32>
    %201 = arith.mulf %200, %199 : vector<32x512xf32>
    %cst_59 = arith.constant 0.707106769 : f32
    %202 = vector.broadcast %cst_59 : f32 to vector<32x512xf32>
    %203 = arith.mulf %199, %202 : vector<32x512xf32>
    %204 = math.erf %203 : vector<32x512xf32>
    %cst_60 = arith.constant 1.000000e+00 : f32
    %205 = vector.broadcast %cst_60 : f32 to vector<32x512xf32>
    %206 = arith.addf %205, %204 : vector<32x512xf32>
    %207 = arith.mulf %201, %206 : vector<32x512xf32>
    %208 = arith.truncf %207 : vector<32x512xf32> to vector<32x512xbf16>
    %c0_61 = arith.constant 0 : index
    %c0_62 = arith.constant 0 : index
    %209 = vector.load %arg13[%c0_61, %c0_62] : memref<512x128xbf16, #tpu.memory_space<vmem>>, vector<512x128xbf16>
    %cst_63 = arith.constant dense<0.000000e+00> : vector<32x128xf32>
    %210 = tpu.matmul %208, %209, %cst_63 {dimension_numbers = #tpu.dot_dimension_numbers<[1], [0], [0], [1], [0, 0, 1, 1], [], []>} : vector<32x512xbf16>, vector<512x128xbf16>, vector<32x128xf32> -> vector<32x128xf32>
    %c0_64 = arith.constant 0 : index
    %c0_65 = arith.constant 0 : index
    %211 = vector.load %arg14[%c0_64, %c0_65] : memref<1x128xf32, #tpu.memory_space<vmem>>, vector<1x128xf32>
    %212 = vector.shape_cast %211 : vector<1x128xf32> to vector<128xf32>
    %213 = vector.shape_cast %212 : vector<128xf32> to vector<1x128xf32>
    %214 = vector.broadcast %213 : vector<1x128xf32> to vector<32x128xf32>
    %215 = arith.addf %210, %214 : vector<32x128xf32>
    %216 = arith.addf %215, %191 : vector<32x128xf32>
    %cst_66 = arith.constant dense<0.000000e+00> : vector<32xf32>
    %217 = vector.multi_reduction <add>, %216, %cst_66 [1] : vector<32x128xf32> to vector<32xf32>
    %218 = vector.shape_cast %217 : vector<32xf32> to vector<32x1xf32>
    %cst_67 = arith.constant 1.280000e+02 : f32
    %219 = vector.broadcast %cst_67 : f32 to vector<32x1xf32>
    %220 = arith.divf %218, %219 : vector<32x1xf32>
    %221 = vector.broadcast %220 : vector<32x1xf32> to vector<32x128xf32>
    %222 = arith.subf %216, %221 : vector<32x128xf32>
    %223 = arith.mulf %222, %222 : vector<32x128xf32>
    %cst_68 = arith.constant dense<0.000000e+00> : vector<32xf32>
    %224 = vector.multi_reduction <add>, %223, %cst_68 [1] : vector<32x128xf32> to vector<32xf32>
    %225 = vector.shape_cast %224 : vector<32xf32> to vector<32x1xf32>
    %cst_69 = arith.constant 1.280000e+02 : f32
    %226 = vector.broadcast %cst_69 : f32 to vector<32x1xf32>
    %227 = arith.divf %225, %226 : vector<32x1xf32>
    %228 = vector.broadcast %220 : vector<32x1xf32> to vector<32x128xf32>
    %229 = arith.subf %216, %228 : vector<32x128xf32>
    %cst_70 = arith.constant 9.99999974E-6 : f32
    %230 = vector.broadcast %cst_70 : f32 to vector<32x1xf32>
    %231 = arith.addf %227, %230 : vector<32x1xf32>
    %232 = math.rsqrt %231 : vector<32x1xf32>
    %233 = vector.broadcast %232 : vector<32x1xf32> to vector<32x128xf32>
    %234 = arith.mulf %229, %233 : vector<32x128xf32>
    %c0_71 = arith.constant 0 : index
    %c0_72 = arith.constant 0 : index
    %235 = vector.load %arg9[%c0_71, %c0_72] : memref<1x128xf32, #tpu.memory_space<vmem>>, vector<1x128xf32>
    %236 = vector.shape_cast %235 : vector<1x128xf32> to vector<128xf32>
    %237 = vector.shape_cast %236 : vector<128xf32> to vector<1x128xf32>
    %238 = vector.broadcast %237 : vector<1x128xf32> to vector<32x128xf32>
    %239 = arith.mulf %234, %238 : vector<32x128xf32>
    %c0_73 = arith.constant 0 : index
    %c0_74 = arith.constant 0 : index
    %240 = vector.load %arg10[%c0_73, %c0_74] : memref<1x128xf32, #tpu.memory_space<vmem>>, vector<1x128xf32>
    %241 = vector.shape_cast %240 : vector<1x128xf32> to vector<128xf32>
    %242 = vector.shape_cast %241 : vector<128xf32> to vector<1x128xf32>
    %243 = vector.broadcast %242 : vector<1x128xf32> to vector<32x128xf32>
    %244 = arith.addf %239, %243 : vector<32x128xf32>
    %c0_75 = arith.constant 0 : index
    %c0_76 = arith.constant 0 : index
    %245 = vector.load %arg15[%c0_75, %c0_76] : memref<32x128xf32, #tpu.memory_space<vmem>>, vector<32x128xf32>
    tpu.vector_store %arg15[%c0_75, %c0_76], %244 {strides = array<i32>} : memref<32x128xf32, #tpu.memory_space<vmem>>, vector<32x128xf32>,
    return
  }
  func.func @transform_0(%arg0: i32) -> (i32, i32) {
    %c0_i32 = arith.constant 0 : i32
    %c0_i32_0 = arith.constant 0 : i32
    %c0_i32_1 = arith.constant 0 : i32
    return %c0_i32, %c0_i32_0 : i32, i32
  }
  func.func @transform_1(%arg0: i32) -> (i32, i32) {
    %c0_i32 = arith.constant 0 : i32
    %c0_i32_0 = arith.constant 0 : i32
    %c0_i32_1 = arith.constant 0 : i32
    return %c0_i32, %c0_i32_0 : i32, i32
  }
  func.func @transform_2(%arg0: i32) -> (i32, i32) {
    %c0_i32 = arith.constant 0 : i32
    %c0_i32_0 = arith.constant 0 : i32
    %c0_i32_1 = arith.constant 0 : i32
    return %c0_i32, %c0_i32_0 : i32, i32
  }
  func.func @transform_3(%arg0: i32) -> (i32, i32) {
    %c0_i32 = arith.constant 0 : i32
    %c0_i32_0 = arith.constant 0 : i32
    %c0_i32_1 = arith.constant 0 : i32
    return %c0_i32, %c0_i32_0 : i32, i32
  }
  func.func @transform_4(%arg0: i32) -> (i32, i32) {
    %c0_i32 = arith.constant 0 : i32
    %c0_i32_0 = arith.constant 0 : i32
    %c0_i32_1 = arith.constant 0 : i32
    return %c0_i32, %c0_i32_0 : i32, i32
  }
  func.func @transform_5(%arg0: i32) -> (i32, i32) {
    %c0_i32 = arith.constant 0 : i32
    %c0_i32_0 = arith.constant 0 : i32
    %c0_i32_1 = arith.constant 0 : i32
    return %c0_i32, %c0_i32_0 : i32, i32
  }
  func.func @transform_6(%arg0: i32) -> (i32, i32) {
    %c0_i32 = arith.constant 0 : i32
    %c0_i32_0 = arith.constant 0 : i32
    %c0_i32_1 = arith.constant 0 : i32
    return %c0_i32, %c0_i32_0 : i32, i32
  }
  func.func @transform_7(%arg0: i32) -> (i32, i32) {
    %c0_i32 = arith.constant 0 : i32
    %c0_i32_0 = arith.constant 0 : i32
    %c0_i32_1 = arith.constant 0 : i32
    return %c0_i32, %c0_i32_0 : i32, i32
  }
  func.func @transform_8(%arg0: i32) -> (i32, i32) {
    %c0_i32 = arith.constant 0 : i32
    %c0_i32_0 = arith.constant 0 : i32
    %c0_i32_1 = arith.constant 0 : i32
    return %c0_i32, %c0_i32_0 : i32, i32
  }
  func.func @transform_9(%arg0: i32) -> (i32, i32) {
    %c0_i32 = arith.constant 0 : i32
    %c0_i32_0 = arith.constant 0 : i32
    %c0_i32_1 = arith.constant 0 : i32
    return %c0_i32, %c0_i32_0 : i32, i32
  }
  func.func @transform_10(%arg0: i32) -> (i32, i32) {
    %c0_i32 = arith.constant 0 : i32
    %c0_i32_0 = arith.constant 0 : i32
    %c0_i32_1 = arith.constant 0 : i32
    return %c0_i32, %c0_i32_0 : i32, i32
  }
  func.func @transform_11(%arg0: i32) -> (i32, i32) {
    %c0_i32 = arith.constant 0 : i32
    %c0_i32_0 = arith.constant 0 : i32
    %c0_i32_1 = arith.constant 0 : i32
    return %c0_i32, %c0_i32_0 : i32, i32
  }
  func.func @transform_12(%arg0: i32) -> (i32, i32) {
    %c0_i32 = arith.constant 0 : i32
    %c0_i32_0 = arith.constant 0 : i32
    %c0_i32_1 = arith.constant 0 : i32
    return %c0_i32, %c0_i32_0 : i32, i32
  }
  func.func @transform_13(%arg0: i32) -> (i32, i32) {
    %c0_i32 = arith.constant 0 : i32
    %c0_i32_0 = arith.constant 0 : i32
    %c0_i32_1 = arith.constant 0 : i32
    return %c0_i32, %c0_i32_0 : i32, i32
  }
  func.func @transform_14(%arg0: i32) -> (i32, i32) {
    %c0_i32 = arith.constant 0 : i32
    %c0_i32_0 = arith.constant 0 : i32
    %c0_i32_1 = arith.constant 0 : i32
    return %c0_i32, %c0_i32_0 : i32, i32
  }
}

</mosaic_0001>

<llo_original>
// kernel: tpu_custom_call.1
$region0: #{tpu_custom_call.1}
  #allocation0 [shape = 'u32[]', space=smem, size = 0x4, offset = 0x4, fixed_abs, tag = 'smem constant byte address 0x4 - core index']
  #allocation1 [shape = 'u32[144,128]{1,0:T(1,128)}', space=vmem, size = 0x12000, scoped, tag = 'internal scratch']
  %s0 = inlined_call_operand.hbm [shape: f32[32,128], index: 0, kind: input, shape index: {}]
  %s1 = inlined_call_operand.hbm [shape: f32[16,16], index: 1, kind: input, shape index: {}]
  %s2 = inlined_call_operand.hbm [shape: bf16[128,384], index: 2, kind: input, shape index: {}]
  %s3 = inlined_call_operand.vmem [shape: f32[1,384], index: 3, kind: input, shape index: {}]
  %s4 = inlined_call_operand.hbm [shape: bf16[128,128], index: 4, kind: input, shape index: {}]
  %s5 = inlined_call_operand.vmem [shape: f32[1,128], index: 5, kind: input, shape index: {}]
  %s6 = inlined_call_operand.vmem [shape: f32[1,128], index: 6, kind: input, shape index: {}]
  %s7 = inlined_call_operand.vmem [shape: f32[1,128], index: 7, kind: input, shape index: {}]
  %s8 = inlined_call_operand.vmem [shape: f32[1,128], index: 8, kind: input, shape index: {}]
  %s9 = inlined_call_operand.vmem [shape: f32[1,128], index: 9, kind: input, shape index: {}]
  %s10 = inlined_call_operand.hbm [shape: bf16[128,512], index: 10, kind: input, shape index: {}]
  %s11 = inlined_call_operand.vmem [shape: f32[1,512], index: 11, kind: input, shape index: {}]
  %s12 = inlined_call_operand.hbm [shape: bf16[512,128], index: 12, kind: input, shape index: {}]
  %s13 = inlined_call_operand.vmem [shape: f32[1,128], index: 13, kind: input, shape index: {}]
  %s14 = inlined_call_operand.hbm [shape: f32[32,128], index: 14, kind: output, shape index: {}]
  %s15 = sld [smem:[#allocation0]]
  $region90: #{tpu_custom_call.1} parent=0
    _
  %s17 = ssub.s32 1, %s15
  %s18 = scalar_select 0, %s17, %s15
  $region1: #{tpu_custom_call.1} parent=0
    #allocation2 [shape = 'u8[16384]{0}', space=vmem, size = 0x4000, scoped, tag = 'input window, operand 0, single buffered']
    #allocation3 [shape = 's32[1]{0}', space=sflag, size = 0x4, scoped, tag = 'scoped memory for tpu_custom_call.1']
    #allocation4 [shape = 's32[1]{0}', space=sflag, size = 0x4, scoped, tag = 'scoped memory for tpu_custom_call.1']
    #allocation5 [shape = 'u8[8192]{0}', space=vmem, size = 0x2000, scoped, tag = 'input window, operand 1, single buffered']
    #allocation6 [shape = 's32[1]{0}', space=sflag, size = 0x4, scoped, tag = 'scoped memory for tpu_custom_call.1']
    #allocation7 [shape = 'u8[98304]{0}', space=vmem, size = 0x18000, scoped, tag = 'input window, operand 2, single buffered']
    #allocation8 [shape = 'u8[32768]{0}', space=vmem, size = 0x8000, scoped, tag = 'input window, operand 4, single buffered']
    #allocation9 [shape = 's32[1]{0}', space=sflag, size = 0x4, scoped, tag = 'scoped memory for tpu_custom_call.1']
    #allocation10 [shape = 'u8[131072]{0}', space=vmem, size = 0x20000, scoped, tag = 'input window, operand 10, single buffered']
    #allocation11 [shape = 'u8[131072]{0}', space=vmem, size = 0x20000, scoped, tag = 'input window, operand 12, single buffered']
    #allocation12 [shape = 's32[1]{0}', space=sflag, size = 0x4, scoped, tag = 'scoped memory for tpu_custom_call.1']
    #allocation13 [shape = 'u8[16384]{0}', space=vmem, size = 0x4000, scoped, tag = 'output window, operand 0, single buffered']
    %19 = vsyncpa [#allocation3], 0
    %20 = vsyncpa [#allocation6], 0
    %21 = vsyncpa [#allocation9], 0
    %22 = vsyncpa [#allocation12], 0
    %23 = vsyncpa [#allocation4], 0
    // Predicated region
    $region2: #{tpu_custom_call.1} parent=1 // pred_check
      _
    $region3: #{tpu_custom_call.1} parent=1 // pred_check_branch
      %25 = sbr.rel (0) target = $region5
    $region4: #{tpu_custom_call.1} parent=1 // pred_region
      %s27 = ssub.s32 512, 512
      %28 = vsyncadd [#allocation3], %s27
      %s29 = sshll.u32 [#allocation2], 4
      %s30 = int_to_ptr.vmem [resolvable:$true] %s29
      %35 = dma.hbm_to_vmem [thread:$0]  %s0, 512, %s30, [#allocation3], 128, 128, 8
    $region5: #{tpu_custom_call.1} parent=1 // pred_fallthru
      _
    // Predicated region
    $region6: #{tpu_custom_call.1} parent=1 // pred_check
      _
    $region7: #{tpu_custom_call.1} parent=1 // pred_check_branch
      %37 = sbr.rel (0) target = $region9
    $region8: #{tpu_custom_call.1} parent=1 // pred_region
      %s39 = ssub.s32 256, 256
      %40 = vsyncadd [#allocation6], %s39
      %s41 = sshll.u32 [#allocation5], 4
      %s42 = int_to_ptr.vmem [resolvable:$true] %s41
      %47 = dma.hbm_to_vmem [thread:$0]  %s1, 256, %s42, [#allocation6], 128, 128, 8
    $region9: #{tpu_custom_call.1} parent=1 // pred_fallthru
      _
    // Predicated region
    $region10: #{tpu_custom_call.1} parent=1 // pred_check
      _
    $region11: #{tpu_custom_call.1} parent=1 // pred_check_branch
      %49 = sbr.rel (0) target = $region13
    $region12: #{tpu_custom_call.1} parent=1 // pred_region
      %s51 = ssub.s32 3072, 3072
      %52 = vsyncadd [#allocation6], %s51
      %s53 = sshll.u32 [#allocation7], 4
      %s54 = int_to_ptr.vmem [resolvable:$true] %s53
      %59 = dma.hbm_to_vmem [thread:$0]  %s2, 3072, %s54, [#allocation6], 192, 192, 12
    $region13: #{tpu_custom_call.1} parent=1 // pred_fallthru
      _
    // Predicated region
    $region14: #{tpu_custom_call.1} parent=1 // pred_check
      _
    $region15: #{tpu_custom_call.1} parent=1 // pred_check_branch
      %61 = sbr.rel (0) target = $region17
    $region16: #{tpu_custom_call.1} parent=1 // pred_region
      _
    $region17: #{tpu_custom_call.1} parent=1 // pred_fallthru
      _
    // Predicated region
    $region18: #{tpu_custom_call.1} parent=1 // pred_check
      _
    $region19: #{tpu_custom_call.1} parent=1 // pred_check_branch
      %63 = sbr.rel (0) target = $region21
    $region20: #{tpu_custom_call.1} parent=1 // pred_region
      %s65 = ssub.s32 1024, 1024
      %66 = vsyncadd [#allocation9], %s65
      %s67 = sshll.u32 [#allocation8], 4
      %s68 = int_to_ptr.vmem [resolvable:$true] %s67
      %73 = dma.hbm_to_vmem [thread:$0]  %s4, 1024, %s68, [#allocation9], 64, 64, 4
    $region21: #{tpu_custom_call.1} parent=1 // pred_fallthru
      _
    // Predicated region
    $region22: #{tpu_custom_call.1} parent=1 // pred_check
      _
    $region23: #{tpu_custom_call.1} parent=1 // pred_check_branch
      %75 = sbr.rel (0) target = $region25
    $region24: #{tpu_custom_call.1} parent=1 // pred_region
      _
    $region25: #{tpu_custom_call.1} parent=1 // pred_fallthru
      _
    // Predicated region
    $region26: #{tpu_custom_call.1} parent=1 // pred_check
      _
    $region27: #{tpu_custom_call.1} parent=1 // pred_check_branch
      %77 = sbr.rel (0) target = $region29
    $region28: #{tpu_custom_call.1} parent=1 // pred_region
      _
    $region29: #{tpu_custom_call.1} parent=1 // pred_fallthru
      _
    // Predicated region
    $region30: #{tpu_custom_call.1} parent=1 // pred_check
      _
    $region31: #{tpu_custom_call.1} parent=1 // pred_check_branch
      %79 = sbr.rel (0) target = $region33
    $region32: #{tpu_custom_call.1} parent=1 // pred_region
      _
    $region33: #{tpu_custom_call.1} parent=1 // pred_fallthru
      _
    // Predicated region
    $region34: #{tpu_custom_call.1} parent=1 // pred_check
      _
    $region35: #{tpu_custom_call.1} parent=1 // pred_check_branch
      %81 = sbr.rel (0) target = $region37
    $region36: #{tpu_custom_call.1} parent=1 // pred_region
      _
    $region37: #{tpu_custom_call.1} parent=1 // pred_fallthru
      _
    // Predicated region
    $region38: #{tpu_custom_call.1} parent=1 // pred_check
      _
    $region39: #{tpu_custom_call.1} parent=1 // pred_check_branch
      %83 = sbr.rel (0) target = $region41
    $region40: #{tpu_custom_call.1} parent=1 // pred_region
      _
    $region41: #{tpu_custom_call.1} parent=1 // pred_fallthru
      _
    // Predicated region
    $region42: #{tpu_custom_call.1} parent=1 // pred_check
      _
    $region43: #{tpu_custom_call.1} parent=1 // pred_check_branch
      %85 = sbr.rel (0) target = $region45
    $region44: #{tpu_custom_call.1} parent=1 // pred_region
      %s87 = ssub.s32 4096, 4096
      %88 = vsyncadd [#allocation9], %s87
      %s89 = sshll.u32 [#allocation10], 4
      %s90 = int_to_ptr.vmem [resolvable:$true] %s89
      %95 = dma.hbm_to_vmem [thread:$0]  %s10, 4096, %s90, [#allocation9], 256, 256, 16
    $region45: #{tpu_custom_call.1} parent=1 // pred_fallthru
      _
    // Predicated region
    $region46: #{tpu_custom_call.1} parent=1 // pred_check
      _
    $region47: #{tpu_custom_call.1} parent=1 // pred_check_branch
      %97 = sbr.rel (0) target = $region49
    $region48: #{tpu_custom_call.1} parent=1 // pred_region
      _
    $region49: #{tpu_custom_call.1} parent=1 // pred_fallthru
      _
    // Predicated region
    $region50: #{tpu_custom_call.1} parent=1 // pred_check
      _
    $region51: #{tpu_custom_call.1} parent=1 // pred_check_branch
      %99 = sbr.rel (0) target = $region53
    $region52: #{tpu_custom_call.1} parent=1 // pred_region
      %s101 = ssub.s32 4096, 4096
      %102 = vsyncadd [#allocation12], %s101
      %s103 = sshll.u32 [#allocation11], 4
      %s104 = int_to_ptr.vmem [resolvable:$true] %s103
      %109 = dma.hbm_to_vmem [thread:$0]  %s12, 4096, %s104, [#allocation12], 64, 64, 4
    $region53: #{tpu_custom_call.1} parent=1 // pred_fallthru
      _
    // Predicated region
    $region54: #{tpu_custom_call.1} parent=1 // pred_check
      _
    $region55: #{tpu_custom_call.1} parent=1 // pred_check_branch
      %111 = sbr.rel (0) target = $region57
    $region56: #{tpu_custom_call.1} parent=1 // pred_region
      _
    $region57: #{tpu_custom_call.1} parent=1 // pred_fallthru
      _
    // Predicated region
    $region58: #{tpu_custom_call.1} parent=1 // pred_check
      _
    $region59: #{tpu_custom_call.1} parent=1 // pred_check_branch
      %113 = sbr.rel (0) target = $region61
    $region60: #{tpu_custom_call.1} parent=1 // pred_region
      %114 = dma.done [#allocation3], 512
    $region61: #{tpu_custom_call.1} parent=1 // pred_fallthru
      _
    // Predicated region
    $region62: #{tpu_custom_call.1} parent=1 // pred_check
      _
    $region63: #{tpu_custom_call.1} parent=1 // pred_check_branch
      %116 = sbr.rel (0) target = $region65
    $region64: #{tpu_custom_call.1} parent=1 // pred_region
      %117 = dma.done [#allocation6], 256
    $region65: #{tpu_custom_call.1} parent=1 // pred_fallthru
      _
    // Predicated region
    $region66: #{tpu_custom_call.1} parent=1 // pred_check
      _
    $region67: #{tpu_custom_call.1} parent=1 // pred_check_branch
      %119 = sbr.rel (0) target = $region69
    $region68: #{tpu_custom_call.1} parent=1 // pred_region
      %120 = dma.done [#allocation6], 3072
    $region69: #{tpu_custom_call.1} parent=1 // pred_fallthru
      _
    // Predicated region
    $region70: #{tpu_custom_call.1} parent=1 // pred_check
      _
    $region71: #{tpu_custom_call.1} parent=1 // pred_check_branch
      %122 = sbr.rel (0) target = $region73
    $region72: #{tpu_custom_call.1} parent=1 // pred_region
      %123 = dma.done [#allocation9], 1024
    $region73: #{tpu_custom_call.1} parent=1 // pred_fallthru
      _
    // Predicated region
    $region74: #{tpu_custom_call.1} parent=1 // pred_check
      _
    $region75: #{tpu_custom_call.1} parent=1 // pred_check_branch
      %125 = sbr.rel (0) target = $region77
    $region76: #{tpu_custom_call.1} parent=1 // pred_region
      %126 = dma.done [#allocation9], 4096
    $region77: #{tpu_custom_call.1} parent=1 // pred_fallthru
      _
    // Predicated region
    $region78: #{tpu_custom_call.1} parent=1 // pred_check
      _
    $region79: #{tpu_custom_call.1} parent=1 // pred_check_branch
      %128 = sbr.rel (0) target = $region81
    $region80: #{tpu_custom_call.1} parent=1 // pred_region
      %129 = dma.done [#allocation12], 4096
    $region81: #{tpu_custom_call.1} parent=1 // pred_fallthru
      _
    %v131 = vld [vmem:[#allocation2] sm:$0xff]
    %v132 = vld [vmem:[#allocation2 + $0x8] sm:$0xff]
    %v133 = vld [vmem:[#allocation2 + $0x10] sm:$0xff]
    %v134 = vld [vmem:[#allocation2 + $0x18] sm:$0xff]
    %v135 = vld [vmem:[#allocation5] sm:$0xff]
    %v136 = vld [vmem:[#allocation5 + $0x8] sm:$0xff]
    %v137 = vpack.c.bf16 %v132, %v131
    %v138 = vpack.c.bf16 %v134, %v133
    %v139 = vld [vmem:[#allocation7] sm:$0xff]
    %v140 = vld [vmem:[#allocation7 + $0x8] sm:$0xf]
    %v141 = vld [vmem:[#allocation7 + $0xc] sm:$0xff]
    %v142 = vld [vmem:[#allocation7 + $0x14] sm:$0xf]
    %v143 = vld [vmem:[#allocation7 + $0x18] sm:$0xff]
    %v144 = vld [vmem:[#allocation7 + $0x20] sm:$0xf]
    %v145 = vld [vmem:[#allocation7 + $0x24] sm:$0xff]
    %v146 = vld [vmem:[#allocation7 + $0x2c] sm:$0xf]
    %v147 = vld [vmem:[#allocation7 + $0x30] sm:$0xff]
    %v148 = vld [vmem:[#allocation7 + $0x38] sm:$0xf]
    %v149 = vld [vmem:[#allocation7 + $0x3c] sm:$0xff]
    %v150 = vld [vmem:[#allocation7 + $0x44] sm:$0xf]
    %v151 = vld [vmem:[#allocation7 + $0x48] sm:$0xff]
    %v152 = vld [vmem:[#allocation7 + $0x50] sm:$0xf]
    %v153 = vld [vmem:[#allocation7 + $0x54] sm:$0xff]
    %v154 = vld [vmem:[#allocation7 + $0x5c] sm:$0xf]
    %v155 = vld [vmem:[#allocation7 + $0x60] sm:$0xff]
    %v156 = vld [vmem:[#allocation7 + $0x68] sm:$0xf]
    %v157 = vld [vmem:[#allocation7 + $0x6c] sm:$0xff]
    %v158 = vld [vmem:[#allocation7 + $0x74] sm:$0xf]
    %v159 = vld [vmem:[#allocation7 + $0x78] sm:$0xff]
    %v160 = vld [vmem:[#allocation7 + $0x80] sm:$0xf]
    %v161 = vld [vmem:[#allocation7 + $0x84] sm:$0xff]
    %v162 = vld [vmem:[#allocation7 + $0x8c] sm:$0xf]
    %v163 = vld [vmem:[#allocation7 + $0x90] sm:$0xff]
    %v164 = vld [vmem:[#allocation7 + $0x98] sm:$0xf]
    %v165 = vld [vmem:[#allocation7 + $0x9c] sm:$0xff]
    %v166 = vld [vmem:[#allocation7 + $0xa4] sm:$0xf]
    %v167 = vld [vmem:[#allocation7 + $0xa8] sm:$0xff]
    %v168 = vld [vmem:[#allocation7 + $0xb0] sm:$0xf]
    %v169 = vld [vmem:[#allocation7 + $0xb4] sm:$0xff]
    %v170 = vld [vmem:[#allocation7 + $0xbc] sm:$0xf]
    %v171 = vld [vmem:[%s3] sm:$0x7]
    %v173 = vlaneseq
    %v174 = vshrl.u32 %v173, 7
    %v175 = vsub.s32 0, %v174
    %v176 = vrot.slane %v171, %v175
    %v177 = vlaneseq
    %v178 = vshrl.u32 %v177, 7
    %v179 = vsub.s32 1, %v178
    %v180 = vrot.slane %v171, %v179
    %v181 = vlaneseq
    %v182 = vshrl.u32 %v181, 7
    %v183 = vsub.s32 2, %v182
    %v184 = vrot.slane %v171, %v183
    %v220 = vunpack.c.l.b16 %v139
    %v221 = vunpack.c.h.b16 %v139
    %v222 = vunpack.c.l.b16 %v140
    %v223 = vunpack.c.l.b16 %v141
    %v224 = vunpack.c.h.b16 %v141
    %v225 = vunpack.c.l.b16 %v142
    %v226 = vunpack.c.l.b16 %v143
    %v227 = vunpack.c.h.b16 %v143
    %v228 = vunpack.c.l.b16 %v144
    %v229 = vunpack.c.l.b16 %v145
    %v230 = vunpack.c.h.b16 %v145
    %v231 = vunpack.c.l.b16 %v146
    %v232 = vunpack.c.l.b16 %v147
    %v233 = vunpack.c.h.b16 %v147
    %v234 = vunpack.c.l.b16 %v148
    %v235 = vunpack.c.l.b16 %v149
    %v236 = vunpack.c.h.b16 %v149
    %v237 = vunpack.c.l.b16 %v150
    %v238 = vunpack.c.l.b16 %v151
    %v239 = vunpack.c.h.b16 %v151
    %v240 = vunpack.c.l.b16 %v152
    %v241 = vunpack.c.l.b16 %v153
    %v242 = vunpack.c.h.b16 %v153
    %v243 = vunpack.c.l.b16 %v154
    %v244 = vunpack.c.l.b16 %v155
    %v245 = vunpack.c.h.b16 %v155
    %v246 = vunpack.c.l.b16 %v156
    %v247 = vunpack.c.l.b16 %v157
    %v248 = vunpack.c.h.b16 %v157
    %v249 = vunpack.c.l.b16 %v158
    %v250 = vunpack.c.l.b16 %v159
    %v251 = vunpack.c.h.b16 %v159
    %v252 = vunpack.c.l.b16 %v160
    %v253 = vunpack.c.l.b16 %v161
    %v254 = vunpack.c.h.b16 %v161
    %v255 = vunpack.c.l.b16 %v162
    %v256 = vunpack.c.l.b16 %v163
    %v257 = vunpack.c.h.b16 %v163
    %v258 = vunpack.c.l.b16 %v164
    %v259 = vunpack.c.l.b16 %v165
    %v260 = vunpack.c.h.b16 %v165
    %v261 = vunpack.c.l.b16 %v166
    %v262 = vunpack.c.l.b16 %v167
    %v263 = vunpack.c.h.b16 %v167
    %v264 = vunpack.c.l.b16 %v168
    %v265 = vunpack.c.l.b16 %v169
    %v266 = vunpack.c.h.b16 %v169
    %v267 = vunpack.c.l.b16 %v170
    %v268 = vpack.c.b16 %v223, %v220
    %v269 = vpack.c.b16 %v224, %v221
    %v270 = vpack.c.b16 %v225, %v222
    %v271 = vpack.c.b16 %v229, %v226
    %v272 = vpack.c.b16 %v230, %v227
    %v273 = vpack.c.b16 %v231, %v228
    %v274 = vpack.c.b16 %v235, %v232
    %v275 = vpack.c.b16 %v236, %v233
    %v276 = vpack.c.b16 %v237, %v234
    %v277 = vpack.c.b16 %v241, %v238
    %v278 = vpack.c.b16 %v242, %v239
    %v279 = vpack.c.b16 %v243, %v240
    %v280 = vpack.c.b16 %v247, %v244
    %v281 = vpack.c.b16 %v248, %v245
    %v282 = vpack.c.b16 %v249, %v246
    %v283 = vpack.c.b16 %v253, %v250
    %v284 = vpack.c.b16 %v254, %v251
    %v285 = vpack.c.b16 %v255, %v252
    %v286 = vpack.c.b16 %v259, %v256
    %v287 = vpack.c.b16 %v260, %v257
    %v288 = vpack.c.b16 %v261, %v258
    %v289 = vpack.c.b16 %v265, %v262
    %v290 = vpack.c.b16 %v266, %v263
    %v291 = vpack.c.b16 %v267, %v264
    %316 = vmatprep.subr.bf16.mxu0 %v290
    %317 = vmatpush1.bf16.msra.mxu0 %v289
    %318 = vmatprep.subr.bf16.mxu0 %v287
    %319 = vmatpush1.bf16.msra.mxu0 %v286
    %320 = vmatprep.subr.bf16.mxu0 %v284
    %321 = vmatpush1.bf16.msra.mxu0 %v283
    %322 = vmatprep.subr.bf16.mxu0 %v281
    %323 = vmatpush1.bf16.msra.mxu0 %v280
    %324 = vmatprep.subr.bf16.mxu0 %v278
    %325 = vmatpush1.bf16.msra.mxu0 %v277
    %326 = vmatprep.subr.bf16.mxu0 %v275
    %327 = vmatpush1.bf16.msra.mxu0 %v274
    %328 = vmatprep.subr.bf16.mxu0 %v272
    %329 = vmatpush1.bf16.msra.mxu0 %v271
    %330 = vmatprep.subr.bf16.mxu0 %v269
    %331 = vmatpush1.bf16.msra.mxu0 %v268
    %332 = vmatprep.subr.bf16.mxu0 0
    %333 = vmatpush2.bf16.msra.mxu0 0
    %334 = vmatprep.subr.bf16.mxu0 0
    %335 = vmatpush2.bf16.msra.mxu0 0
    %336 = vmatprep.subr.bf16.mxu0 0
    %337 = vmatpush2.bf16.msra.mxu0 0
    %338 = vmatprep.subr.bf16.mxu0 0
    %339 = vmatpush2.bf16.msra.mxu0 0
    %340 = vmatprep.subr.bf16.mxu0 0
    %341 = vmatpush2.bf16.msra.mxu0 0
    %342 = vmatprep.subr.bf16.mxu0 0
    %343 = vmatpush2.bf16.msra.mxu0 0
    %344 = vmatprep.subr.bf16.mxu0 0
    %345 = vmatpush2.bf16.msra.mxu0 0
    %346 = vmatprep.subr.bf16.mxu0 0
    %347 = vmatpush2.bf16.msra.mxu0 0
    %348 = vmatprep.mubr.bf16.mxu0 0
    %349 = vmatmul.mubr.bf16.gmra.mxu0 %v137
    %v350 = vpop.f32.mrf.mxu0
    %v351 = vadd.f32 %v176, %v350
    %v352 = vpop.f32.mrf.mxu0
    %v353 = vadd.f32 %v180, %v352
    %v354 = vpop.f32.mrf.mxu0
    %v355 = vadd.f32 %v176, %v354
    %v356 = vpop.f32.mrf.mxu0
    %v357 = vadd.f32 %v180, %v356
    %358 = vmatprep.mubr.bf16.mxu0 0
    %359 = vmatmul.mubr.bf16.gmra.mxu0 %v138
    %v360 = vpop.f32.mrf.mxu0
    %v361 = vadd.f32 %v176, %v360
    %v362 = vpop.f32.mrf.mxu0
    %v363 = vadd.f32 %v180, %v362
    %v364 = vpop.f32.mrf.mxu0
    %v365 = vadd.f32 %v176, %v364
    %v366 = vpop.f32.mrf.mxu0
    %v367 = vadd.f32 %v180, %v366
    %368 = vdwg.mxu0
    %369 = vmatprep.subr.bf16.mxu0 0
    %370 = vmatpush1.bf16.msra.mxu0 %v291
    %371 = vmatprep.subr.bf16.mxu0 0
    %372 = vmatpush1.bf16.msra.mxu0 %v288
    %373 = vmatprep.subr.bf16.mxu0 0
    %374 = vmatpush1.bf16.msra.mxu0 %v285
    %375 = vmatprep.subr.bf16.mxu0 0
    %376 = vmatpush1.bf16.msra.mxu0 %v282
    %377 = vmatprep.subr.bf16.mxu0 0
    %378 = vmatpush1.bf16.msra.mxu0 %v279
    %379 = vmatprep.subr.bf16.mxu0 0
    %380 = vmatpush1.bf16.msra.mxu0 %v276
    %381 = vmatprep.subr.bf16.mxu0 0
    %382 = vmatpush1.bf16.msra.mxu0 %v273
    %383 = vmatprep.subr.bf16.mxu0 0
    %384 = vmatpush1.bf16.msra.mxu0 %v270
    %385 = vmatprep.subr.bf16.mxu0 0
    %386 = vmatpush2.bf16.msra.mxu0 0
    %387 = vmatprep.subr.bf16.mxu0 0
    %388 = vmatpush2.bf16.msra.mxu0 0
    %389 = vmatprep.subr.bf16.mxu0 0
    %390 = vmatpush2.bf16.msra.mxu0 0
    %391 = vmatprep.subr.bf16.mxu0 0
    %392 = vmatpush2.bf16.msra.mxu0 0
    %393 = vmatprep.subr.bf16.mxu0 0
    %394 = vmatpush2.bf16.msra.mxu0 0
    %395 = vmatprep.subr.bf16.mxu0 0
    %396 = vmatpush2.bf16.msra.mxu0 0
    %397 = vmatprep.subr.bf16.mxu0 0
    %398 = vmatpush2.bf16.msra.mxu0 0
    %399 = vmatprep.subr.bf16.mxu0 0
    %400 = vmatpush2.bf16.msra.mxu0 0
    %401 = vmatprep.mubr.bf16.mxu0 0
    %402 = vmatmul.mubr.bf16.gmra.mxu0 %v137
    %v403 = vpop.f32.mrf.mxu0
    %v404 = vadd.f32 %v184, %v403
    %v405 = vpop.f32.mrf.mxu0
    %v406 = vpop.f32.mrf.mxu0
    %v407 = vadd.f32 %v184, %v406
    %v408 = vpop.f32.mrf.mxu0
    %409 = vmatprep.mubr.bf16.mxu0 0
    %410 = vmatmul.mubr.bf16.gmra.mxu0 %v138
    %v411 = vpop.f32.mrf.mxu0
    %v412 = vadd.f32 %v184, %v411
    %v413 = vpop.f32.mrf.mxu0
    %v414 = vpop.f32.mrf.mxu0
    %v415 = vadd.f32 %v184, %v414
    %v416 = vpop.f32.mrf.mxu0
    %417 = vdwg.mxu0
    %v418 = vpack.c.bf16 %v355, %v351
    %v419 = vpack.c.bf16 %v365, %v361
    %v420 = vpack.c.bf16 %v357, %v353
    %v421 = vpack.c.bf16 %v367, %v363
    %v422 = vpack.c.bf16 %v407, %v404
    %v423 = vpack.c.bf16 %v415, %v412
    %vm424 = vcmask 261120
    %v426 = vsel %vm424, %v418, 0
    %v429 = vsel %vm424, %v420, 0
    %431 = vmatprep.subr.bf16.mxu0 0
    %432 = vmatpush1.bf16.xpose.msra.mxu0 0
    %433 = vmatprep.subr.bf16.mxu0 0
    %434 = vmatpush1.bf16.xpose.msra.mxu0 0
    %435 = vmatprep.subr.bf16.mxu0 0
    %436 = vmatpush1.bf16.xpose.msra.mxu0 0
    %437 = vmatprep.subr.bf16.mxu0 0
    %438 = vmatpush1.bf16.xpose.msra.mxu0 0
    %439 = vmatprep.subr.bf16.mxu0 0
    %440 = vmatpush1.bf16.xpose.msra.mxu0 0
    %441 = vmatprep.subr.bf16.mxu0 0
    %442 = vmatpush1.bf16.xpose.msra.mxu0 0
    %443 = vmatprep.subr.bf16.mxu0 0
    %444 = vmatpush1.bf16.xpose.msra.mxu0 0
    %445 = vmatprep.subr.bf16.mxu0 0
    %446 = vmatpush1.bf16.xpose.msra.mxu0 %v429
    %447 = vmatprep.subr.bf16.mxu0 0
    %448 = vmatpush2.bf16.xpose.msra.mxu0 0
    %449 = vmatprep.subr.bf16.mxu0 0
    %450 = vmatpush2.bf16.xpose.msra.mxu0 0
    %451 = vmatprep.subr.bf16.mxu0 0
    %452 = vmatpush2.bf16.xpose.msra.mxu0 0
    %453 = vmatprep.subr.bf16.mxu0 0
    %454 = vmatpush2.bf16.xpose.msra.mxu0 0
    %455 = vmatprep.subr.bf16.mxu0 0
    %456 = vmatpush2.bf16.xpose.msra.mxu0 0
    %457 = vmatprep.subr.bf16.mxu0 0
    %458 = vmatpush2.bf16.xpose.msra.mxu0 0
    %459 = vmatprep.subr.bf16.mxu0 0
    %460 = vmatpush2.bf16.xpose.msra.mxu0 0
    %461 = vmatprep.subr.bf16.mxu0 0
    %462 = vmatpush2.bf16.xpose.msra.mxu0 0
    %463 = vmatprep.mubr.bf16.mxu0 0
    %464 = vmatmul.mubr.bf16.gmra.mxu0 %v426
    %v465 = vpop.f32.mrf.mxu0
    %v466 = vadd.f32 %v135, %v465
    %v467 = vpop.f32.mrf.mxu0
    %v468 = vpop.f32.mrf.mxu0
    %v469 = vadd.f32 %v136, %v468
    %v470 = vpop.f32.mrf.mxu0
    %471 = vdwg.mxu0
    %vm472 = vcmask 130048
    %v473 = vsel %vm472, %v466, -inf
    %474 = vmax.xlane.f32.xlu0 %v473
    %v475 = vpop.xlane.xlu0 %474
    %v476 = vsel %vm472, %v469, -inf
    %477 = vmax.xlane.f32.xlu0 %v476
    %v478 = vpop.xlane.xlu0 %477
    %v479 = vsub.f32 %v466, %v475
    %v480 = vsub.f32 %v469, %v478
    %v481 = vmul.f32 %v479, 1.442695
    %v482 = vpow.pop %v481
    %v483 = vmul.f32 %v480, 1.442695
    %v484 = vpow.pop %v483
    %v485 = vsel %vm472, %v482, 0.0
    %486 = vadd.xlane.f32.xlu0 %v485
    %v487 = vpop.xlane.xlu0 %486
    %v488 = vsel %vm472, %v484, 0.0
    %489 = vadd.xlane.f32.xlu0 %v488
    %v490 = vpop.xlane.xlu0 %489
    %v491 = vrcp.pop %v487
    %v492 = vrcp.pop %v490
    %v493 = vmul.f32 %v482, %v491
    %v494 = vmul.f32 %v484, %v492
    %v495 = vpack.c.bf16 %v494, %v493
    %v497 = vsel %vm472, %v495, 0
    %499 = vmatprep.subr.bf16.mxu0 0
    %500 = vmatpush1.bf16.msra.mxu0 0
    %501 = vmatprep.subr.bf16.mxu0 0
    %502 = vmatpush1.bf16.msra.mxu0 0
    %503 = vmatprep.subr.bf16.mxu0 0
    %504 = vmatpush1.bf16.msra.mxu0 0
    %505 = vmatprep.subr.bf16.mxu0 0
    %506 = vmatpush1.bf16.msra.mxu0 0
    %507 = vmatprep.subr.bf16.mxu0 0
    %508 = vmatpush1.bf16.msra.mxu0 0
    %509 = vmatprep.subr.bf16.mxu0 0
    %510 = vmatpush1.bf16.msra.mxu0 0
    %511 = vmatprep.subr.bf16.mxu0 0
    %512 = vmatpush1.bf16.msra.mxu0 0
    %513 = vmatprep.subr.bf16.mxu0 0
    %514 = vmatpush1.bf16.msra.mxu0 %v422
    %515 = vmatprep.subr.bf16.mxu0 0
    %516 = vmatpush2.bf16.msra.mxu0 0
    %517 = vmatprep.subr.bf16.mxu0 0
    %518 = vmatpush2.bf16.msra.mxu0 0
    %519 = vmatprep.subr.bf16.mxu0 0
    %520 = vmatpush2.bf16.msra.mxu0 0
    %521 = vmatprep.subr.bf16.mxu0 0
    %522 = vmatpush2.bf16.msra.mxu0 0
    %523 = vmatprep.subr.bf16.mxu0 0
    %524 = vmatpush2.bf16.msra.mxu0 0
    %525 = vmatprep.subr.bf16.mxu0 0
    %526 = vmatpush2.bf16.msra.mxu0 0
    %527 = vmatprep.subr.bf16.mxu0 0
    %528 = vmatpush2.bf16.msra.mxu0 0
    %529 = vmatprep.subr.bf16.mxu0 0
    %530 = vmatpush2.bf16.msra.mxu0 0
    %531 = vmatprep.mubr.bf16.mxu0 0
    %532 = vmatmul.mubr.bf16.gmra.mxu0 %v497
    %v533 = vpop.f32.mrf.mxu0
    %v534 = vadd.f32 0.0, %v533
    %v535 = vpop.f32.mrf.mxu0
    %v536 = vpop.f32.mrf.mxu0
    %v537 = vadd.f32 0.0, %v536
    %v538 = vpop.f32.mrf.mxu0
    %539 = vdwg.mxu0
    %541 = vrot.lane.b32.xlu0 %v418, 96
    %v542 = vpop.permute.xlu0 %541
    %544 = vrot.lane.b32.xlu0 %v420, 96
    %v545 = vpop.permute.xlu0 %544
    %v547 = vsel %vm424, %v542, 0
    %v550 = vsel %vm424, %v545, 0
    %552 = vmatprep.subr.bf16.mxu0 0
    %553 = vmatpush1.bf16.xpose.msra.mxu0 0
    %554 = vmatprep.subr.bf16.mxu0 0
    %555 = vmatpush1.bf16.xpose.msra.mxu0 0
    %556 = vmatprep.subr.bf16.mxu0 0
    %557 = vmatpush1.bf16.xpose.msra.mxu0 0
    %558 = vmatprep.subr.bf16.mxu0 0
    %559 = vmatpush1.bf16.xpose.msra.mxu0 0
    %560 = vmatprep.subr.bf16.mxu0 0
    %561 = vmatpush1.bf16.xpose.msra.mxu0 0
    %562 = vmatprep.subr.bf16.mxu0 0
    %563 = vmatpush1.bf16.xpose.msra.mxu0 0
    %564 = vmatprep.subr.bf16.mxu0 0
    %565 = vmatpush1.bf16.xpose.msra.mxu0 0
    %566 = vmatprep.subr.bf16.mxu0 0
    %567 = vmatpush1.bf16.xpose.msra.mxu0 %v550
    %568 = vmatprep.subr.bf16.mxu0 0
    %569 = vmatpush2.bf16.xpose.msra.mxu0 0
    %570 = vmatprep.subr.bf16.mxu0 0
    %571 = vmatpush2.bf16.xpose.msra.mxu0 0
    %572 = vmatprep.subr.bf16.mxu0 0
    %573 = vmatpush2.bf16.xpose.msra.mxu0 0
    %574 = vmatprep.subr.bf16.mxu0 0
    %575 = vmatpush2.bf16.xpose.msra.mxu0 0
    %576 = vmatprep.subr.bf16.mxu0 0
    %577 = vmatpush2.bf16.xpose.msra.mxu0 0
    %578 = vmatprep.subr.bf16.mxu0 0
    %579 = vmatpush2.bf16.xpose.msra.mxu0 0
    %580 = vmatprep.subr.bf16.mxu0 0
    %581 = vmatpush2.bf16.xpose.msra.mxu0 0
    %582 = vmatprep.subr.bf16.mxu0 0
    %583 = vmatpush2.bf16.xpose.msra.mxu0 0
    %584 = vmatprep.mubr.bf16.mxu0 0
    %585 = vmatmul.mubr.bf16.gmra.mxu0 %v547
    %v586 = vpop.f32.mrf.mxu0
    %v587 = vadd.f32 %v135, %v586
    %v588 = vpop.f32.mrf.mxu0
    %v589 = vpop.f32.mrf.mxu0
    %v590 = vadd.f32 %v136, %v589
    %v591 = vpop.f32.mrf.mxu0
    %592 = vdwg.mxu0
    %v593 = vsel %vm472, %v587, -inf
    %594 = vmax.xlane.f32.xlu0 %v593
    %v595 = vpop.xlane.xlu0 %594
    %v596 = vsel %vm472, %v590, -inf
    %597 = vmax.xlane.f32.xlu0 %v596
    %v598 = vpop.xlane.xlu0 %597
    %v599 = vsub.f32 %v587, %v595
    %v600 = vsub.f32 %v590, %v598
    %v601 = vmul.f32 %v599, 1.442695
    %v602 = vpow.pop %v601
    %v603 = vmul.f32 %v600, 1.442695
    %v604 = vpow.pop %v603
    %v605 = vsel %vm472, %v602, 0.0
    %606 = vadd.xlane.f32.xlu0 %v605
    %v607 = vpop.xlane.xlu0 %606
    %v608 = vsel %vm472, %v604, 0.0
    %609 = vadd.xlane.f32.xlu0 %v608
    %v610 = vpop.xlane.xlu0 %609
    %v611 = vrcp.pop %v607
    %v612 = vrcp.pop %v610
    %v613 = vmul.f32 %v602, %v611
    %v614 = vmul.f32 %v604, %v612
    %v615 = vpack.c.bf16 %v614, %v613
    %617 = vrot.lane.b32.xlu0 %v422, 96
    %v618 = vpop.permute.xlu0 %617
    %v621 = vsel %vm472, %v615, 0
    %623 = vmatprep.subr.bf16.mxu0 0
    %624 = vmatpush1.bf16.msra.mxu0 0
    %625 = vmatprep.subr.bf16.mxu0 0
    %626 = vmatpush1.bf16.msra.mxu0 0
    %627 = vmatprep.subr.bf16.mxu0 0
    %628 = vmatpush1.bf16.msra.mxu0 0
    %629 = vmatprep.subr.bf16.mxu0 0
    %630 = vmatpush1.bf16.msra.mxu0 0
    %631 = vmatprep.subr.bf16.mxu0 0
    %632 = vmatpush1.bf16.msra.mxu0 0
    %633 = vmatprep.subr.bf16.mxu0 0
    %634 = vmatpush1.bf16.msra.mxu0 0
    %635 = vmatprep.subr.bf16.mxu0 0
    %636 = vmatpush1.bf16.msra.mxu0 0
    %637 = vmatprep.subr.bf16.mxu0 0
    %638 = vmatpush1.bf16.msra.mxu0 %v618
    %639 = vmatprep.subr.bf16.mxu0 0
    %640 = vmatpush2.bf16.msra.mxu0 0
    %641 = vmatprep.subr.bf16.mxu0 0
    %642 = vmatpush2.bf16.msra.mxu0 0
    %643 = vmatprep.subr.bf16.mxu0 0
    %644 = vmatpush2.bf16.msra.mxu0 0
    %645 = vmatprep.subr.bf16.mxu0 0
    %646 = vmatpush2.bf16.msra.mxu0 0
    %647 = vmatprep.subr.bf16.mxu0 0
    %648 = vmatpush2.bf16.msra.mxu0 0
    %649 = vmatprep.subr.bf16.mxu0 0
    %650 = vmatpush2.bf16.msra.mxu0 0
    %651 = vmatprep.subr.bf16.mxu0 0
    %652 = vmatpush2.bf16.msra.mxu0 0
    %653 = vmatprep.subr.bf16.mxu0 0
    %654 = vmatpush2.bf16.msra.mxu0 0
    %655 = vmatprep.mubr.bf16.mxu0 0
    %656 = vmatmul.mubr.bf16.gmra.mxu0 %v621
    %v657 = vpop.f32.mrf.mxu0
    %v658 = vadd.f32 0.0, %v657
    %v659 = vpop.f32.mrf.mxu0
    %v660 = vpop.f32.mrf.mxu0
    %v661 = vadd.f32 0.0, %v660
    %v662 = vpop.f32.mrf.mxu0
    %663 = vdwg.mxu0
    %664 = vrot.lane.b32.xlu0 %v418, 64
    %v665 = vpop.permute.xlu0 %664
    %666 = vrot.lane.b32.xlu0 %v420, 64
    %v667 = vpop.permute.xlu0 %666
    %v669 = vsel %vm424, %v665, 0
    %v672 = vsel %vm424, %v667, 0
    %674 = vmatprep.subr.bf16.mxu0 0
    %675 = vmatpush1.bf16.xpose.msra.mxu0 0
    %676 = vmatprep.subr.bf16.mxu0 0
    %677 = vmatpush1.bf16.xpose.msra.mxu0 0
    %678 = vmatprep.subr.bf16.mxu0 0
    %679 = vmatpush1.bf16.xpose.msra.mxu0 0
    %680 = vmatprep.subr.bf16.mxu0 0
    %681 = vmatpush1.bf16.xpose.msra.mxu0 0
    %682 = vmatprep.subr.bf16.mxu0 0
    %683 = vmatpush1.bf16.xpose.msra.mxu0 0
    %684 = vmatprep.subr.bf16.mxu0 0
    %685 = vmatpush1.bf16.xpose.msra.mxu0 0
    %686 = vmatprep.subr.bf16.mxu0 0
    %687 = vmatpush1.bf16.xpose.msra.mxu0 0
    %688 = vmatprep.subr.bf16.mxu0 0
    %689 = vmatpush1.bf16.xpose.msra.mxu0 %v672
    %690 = vmatprep.subr.bf16.mxu0 0
    %691 = vmatpush2.bf16.xpose.msra.mxu0 0
    %692 = vmatprep.subr.bf16.mxu0 0
    %693 = vmatpush2.bf16.xpose.msra.mxu0 0
    %694 = vmatprep.subr.bf16.mxu0 0
    %695 = vmatpush2.bf16.xpose.msra.mxu0 0
    %696 = vmatprep.subr.bf16.mxu0 0
    %697 = vmatpush2.bf16.xpose.msra.mxu0 0
    %698 = vmatprep.subr.bf16.mxu0 0
    %699 = vmatpush2.bf16.xpose.msra.mxu0 0
    %700 = vmatprep.subr.bf16.mxu0 0
    %701 = vmatpush2.bf16.xpose.msra.mxu0 0
    %702 = vmatprep.subr.bf16.mxu0 0
    %703 = vmatpush2.bf16.xpose.msra.mxu0 0
    %704 = vmatprep.subr.bf16.mxu0 0
    %705 = vmatpush2.bf16.xpose.msra.mxu0 0
    %706 = vmatprep.mubr.bf16.mxu0 0
    %707 = vmatmul.mubr.bf16.gmra.mxu0 %v669
    %v708 = vpop.f32.mrf.mxu0
    %v709 = vadd.f32 %v135, %v708
    %v710 = vpop.f32.mrf.mxu0
    %v711 = vpop.f32.mrf.mxu0
    %v712 = vadd.f32 %v136, %v711
    %v713 = vpop.f32.mrf.mxu0
    %714 = vdwg.mxu0
    %v715 = vsel %vm472, %v709, -inf
    %716 = vmax.xlane.f32.xlu0 %v715
    %v717 = vpop.xlane.xlu0 %716
    %v718 = vsel %vm472, %v712, -inf
    %719 = vmax.xlane.f32.xlu0 %v718
    %v720 = vpop.xlane.xlu0 %719
    %v721 = vsub.f32 %v709, %v717
    %v722 = vsub.f32 %v712, %v720
    %v723 = vmul.f32 %v721, 1.442695
    %v724 = vpow.pop %v723
    %v725 = vmul.f32 %v722, 1.442695
    %v726 = vpow.pop %v725
    %v727 = vsel %vm472, %v724, 0.0
    %728 = vadd.xlane.f32.xlu0 %v727
    %v729 = vpop.xlane.xlu0 %728
    %v730 = vsel %vm472, %v726, 0.0
    %731 = vadd.xlane.f32.xlu0 %v730
    %v732 = vpop.xlane.xlu0 %731
    %v733 = vrcp.pop %v729
    %v734 = vrcp.pop %v732
    %v735 = vmul.f32 %v724, %v733
    %v736 = vmul.f32 %v726, %v734
    %v737 = vpack.c.bf16 %v736, %v735
    %738 = vrot.lane.b32.xlu0 %v422, 64
    %v739 = vpop.permute.xlu0 %738
    %v742 = vsel %vm472, %v737, 0
    %744 = vmatprep.subr.bf16.mxu0 0
    %745 = vmatpush1.bf16.msra.mxu0 0
    %746 = vmatprep.subr.bf16.mxu0 0
    %747 = vmatpush1.bf16.msra.mxu0 0
    %748 = vmatprep.subr.bf16.mxu0 0
    %749 = vmatpush1.bf16.msra.mxu0 0
    %750 = vmatprep.subr.bf16.mxu0 0
    %751 = vmatpush1.bf16.msra.mxu0 0
    %752 = vmatprep.subr.bf16.mxu0 0
    %753 = vmatpush1.bf16.msra.mxu0 0
    %754 = vmatprep.subr.bf16.mxu0 0
    %755 = vmatpush1.bf16.msra.mxu0 0
    %756 = vmatprep.subr.bf16.mxu0 0
    %757 = vmatpush1.bf16.msra.mxu0 0
    %758 = vmatprep.subr.bf16.mxu0 0
    %759 = vmatpush1.bf16.msra.mxu0 %v739
    %760 = vmatprep.subr.bf16.mxu0 0
    %761 = vmatpush2.bf16.msra.mxu0 0
    %762 = vmatprep.subr.bf16.mxu0 0
    %763 = vmatpush2.bf16.msra.mxu0 0
    %764 = vmatprep.subr.bf16.mxu0 0
    %765 = vmatpush2.bf16.msra.mxu0 0
    %766 = vmatprep.subr.bf16.mxu0 0
    %767 = vmatpush2.bf16.msra.mxu0 0
    %768 = vmatprep.subr.bf16.mxu0 0
    %769 = vmatpush2.bf16.msra.mxu0 0
    %770 = vmatprep.subr.bf16.mxu0 0
    %771 = vmatpush2.bf16.msra.mxu0 0
    %772 = vmatprep.subr.bf16.mxu0 0
    %773 = vmatpush2.bf16.msra.mxu0 0
    %774 = vmatprep.subr.bf16.mxu0 0
    %775 = vmatpush2.bf16.msra.mxu0 0
    %776 = vmatprep.mubr.bf16.mxu0 0
    %777 = vmatmul.mubr.bf16.gmra.mxu0 %v742
    %v778 = vpop.f32.mrf.mxu0
    %v779 = vadd.f32 0.0, %v778
    %v780 = vpop.f32.mrf.mxu0
    %v781 = vpop.f32.mrf.mxu0
    %v782 = vadd.f32 0.0, %v781
    %v783 = vpop.f32.mrf.mxu0
    %784 = vdwg.mxu0
    %785 = vrot.lane.b32.xlu0 %v418, 32
    %v786 = vpop.permute.xlu0 %785
    %787 = vrot.lane.b32.xlu0 %v420, 32
    %v788 = vpop.permute.xlu0 %787
    %v790 = vsel %vm424, %v786, 0
    %v793 = vsel %vm424, %v788, 0
    %795 = vmatprep.subr.bf16.mxu0 0
    %796 = vmatpush1.bf16.xpose.msra.mxu0 0
    %797 = vmatprep.subr.bf16.mxu0 0
    %798 = vmatpush1.bf16.xpose.msra.mxu0 0
    %799 = vmatprep.subr.bf16.mxu0 0
    %800 = vmatpush1.bf16.xpose.msra.mxu0 0
    %801 = vmatprep.subr.bf16.mxu0 0
    %802 = vmatpush1.bf16.xpose.msra.mxu0 0
    %803 = vmatprep.subr.bf16.mxu0 0
    %804 = vmatpush1.bf16.xpose.msra.mxu0 0
    %805 = vmatprep.subr.bf16.mxu0 0
    %806 = vmatpush1.bf16.xpose.msra.mxu0 0
    %807 = vmatprep.subr.bf16.mxu0 0
    %808 = vmatpush1.bf16.xpose.msra.mxu0 0
    %809 = vmatprep.subr.bf16.mxu0 0
    %810 = vmatpush1.bf16.xpose.msra.mxu0 %v793
    %811 = vmatprep.subr.bf16.mxu0 0
    %812 = vmatpush2.bf16.xpose.msra.mxu0 0
    %813 = vmatprep.subr.bf16.mxu0 0
    %814 = vmatpush2.bf16.xpose.msra.mxu0 0
    %815 = vmatprep.subr.bf16.mxu0 0
    %816 = vmatpush2.bf16.xpose.msra.mxu0 0
    %817 = vmatprep.subr.bf16.mxu0 0
    %818 = vmatpush2.bf16.xpose.msra.mxu0 0
    %819 = vmatprep.subr.bf16.mxu0 0
    %820 = vmatpush2.bf16.xpose.msra.mxu0 0
    %821 = vmatprep.subr.bf16.mxu0 0
    %822 = vmatpush2.bf16.xpose.msra.mxu0 0
    %823 = vmatprep.subr.bf16.mxu0 0
    %824 = vmatpush2.bf16.xpose.msra.mxu0 0
    %825 = vmatprep.subr.bf16.mxu0 0
    %826 = vmatpush2.bf16.xpose.msra.mxu0 0
    %827 = vmatprep.mubr.bf16.mxu0 0
    %828 = vmatmul.mubr.bf16.gmra.mxu0 %v790
    %v829 = vpop.f32.mrf.mxu0
    %v830 = vadd.f32 %v135, %v829
    %v831 = vpop.f32.mrf.mxu0
    %v832 = vpop.f32.mrf.mxu0
    %v833 = vadd.f32 %v136, %v832
    %v834 = vpop.f32.mrf.mxu0
    %835 = vdwg.mxu0
    %v836 = vsel %vm472, %v830, -inf
    %837 = vmax.xlane.f32.xlu0 %v836
    %v838 = vpop.xlane.xlu0 %837
    %v839 = vsel %vm472, %v833, -inf
    %840 = vmax.xlane.f32.xlu0 %v839
    %v841 = vpop.xlane.xlu0 %840
    %v842 = vsub.f32 %v830, %v838
    %v843 = vsub.f32 %v833, %v841
    %v844 = vmul.f32 %v842, 1.442695
    %v845 = vpow.pop %v844
    %v846 = vmul.f32 %v843, 1.442695
    %v847 = vpow.pop %v846
    %v848 = vsel %vm472, %v845, 0.0
    %849 = vadd.xlane.f32.xlu0 %v848
    %v850 = vpop.xlane.xlu0 %849
    %v851 = vsel %vm472, %v847, 0.0
    %852 = vadd.xlane.f32.xlu0 %v851
    %v853 = vpop.xlane.xlu0 %852
    %v854 = vrcp.pop %v850
    %v855 = vrcp.pop %v853
    %v856 = vmul.f32 %v845, %v854
    %v857 = vmul.f32 %v847, %v855
    %v858 = vpack.c.bf16 %v857, %v856
    %859 = vrot.lane.b32.xlu0 %v422, 32
    %v860 = vpop.permute.xlu0 %859
    %v863 = vsel %vm472, %v858, 0
    %865 = vmatprep.subr.bf16.mxu0 0
    %866 = vmatpush1.bf16.msra.mxu0 0
    %867 = vmatprep.subr.bf16.mxu0 0
    %868 = vmatpush1.bf16.msra.mxu0 0
    %869 = vmatprep.subr.bf16.mxu0 0
    %870 = vmatpush1.bf16.msra.mxu0 0
    %871 = vmatprep.subr.bf16.mxu0 0
    %872 = vmatpush1.bf16.msra.mxu0 0
    %873 = vmatprep.subr.bf16.mxu0 0
    %874 = vmatpush1.bf16.msra.mxu0 0
    %875 = vmatprep.subr.bf16.mxu0 0
    %876 = vmatpush1.bf16.msra.mxu0 0
    %877 = vmatprep.subr.bf16.mxu0 0
    %878 = vmatpush1.bf16.msra.mxu0 0
    %879 = vmatprep.subr.bf16.mxu0 0
    %880 = vmatpush1.bf16.msra.mxu0 %v860
    %881 = vmatprep.subr.bf16.mxu0 0
    %882 = vmatpush2.bf16.msra.mxu0 0
    %883 = vmatprep.subr.bf16.mxu0 0
    %884 = vmatpush2.bf16.msra.mxu0 0
    %885 = vmatprep.subr.bf16.mxu0 0
    %886 = vmatpush2.bf16.msra.mxu0 0
    %887 = vmatprep.subr.bf16.mxu0 0
    %888 = vmatpush2.bf16.msra.mxu0 0
    %889 = vmatprep.subr.bf16.mxu0 0
    %890 = vmatpush2.bf16.msra.mxu0 0
    %891 = vmatprep.subr.bf16.mxu0 0
    %892 = vmatpush2.bf16.msra.mxu0 0
    %893 = vmatprep.subr.bf16.mxu0 0
    %894 = vmatpush2.bf16.msra.mxu0 0
    %895 = vmatprep.subr.bf16.mxu0 0
    %896 = vmatpush2.bf16.msra.mxu0 0
    %897 = vmatprep.mubr.bf16.mxu0 0
    %898 = vmatmul.mubr.bf16.gmra.mxu0 %v863
    %v899 = vpop.f32.mrf.mxu0
    %v900 = vadd.f32 0.0, %v899
    %v901 = vpop.f32.mrf.mxu0
    %v902 = vpop.f32.mrf.mxu0
    %v903 = vadd.f32 0.0, %v902
    %v904 = vpop.f32.mrf.mxu0
    %905 = vdwg.mxu0
    %908 = vrot.lane.b32.xlu0 %v658, 32
    %v909 = vpop.permute.xlu0 %908
    %910 = vrot.lane.b32.xlu0 %v661, 32
    %v911 = vpop.permute.xlu0 %910
    %916 = vrot.lane.b32.xlu0 %v779, 64
    %v917 = vpop.permute.xlu0 %916
    %918 = vrot.lane.b32.xlu0 %v782, 64
    %v919 = vpop.permute.xlu0 %918
    %924 = vrot.lane.b32.xlu0 %v900, 96
    %v925 = vpop.permute.xlu0 %924
    %926 = vrot.lane.b32.xlu0 %v903, 96
    %v927 = vpop.permute.xlu0 %926
    %v930 = vsel %vm424, %v534, %v909
    %v931 = vsel %vm424, %v537, %v911
    %vm932 = vcmask 523264
    %v933 = vsel %vm932, %v930, %v917
    %v934 = vsel %vm932, %v931, %v919
    %vm935 = vcmask 785408
    %v936 = vsel %vm935, %v933, %v925
    %v937 = vsel %vm935, %v934, %v927
    %v939 = vsel %vm424, %v419, 0
    %v942 = vsel %vm424, %v421, 0
    %944 = vmatprep.subr.bf16.mxu0 0
    %945 = vmatpush1.bf16.xpose.msra.mxu0 0
    %946 = vmatprep.subr.bf16.mxu0 0
    %947 = vmatpush1.bf16.xpose.msra.mxu0 0
    %948 = vmatprep.subr.bf16.mxu0 0
    %949 = vmatpush1.bf16.xpose.msra.mxu0 0
    %950 = vmatprep.subr.bf16.mxu0 0
    %951 = vmatpush1.bf16.xpose.msra.mxu0 0
    %952 = vmatprep.subr.bf16.mxu0 0
    %953 = vmatpush1.bf16.xpose.msra.mxu0 0
    %954 = vmatprep.subr.bf16.mxu0 0
    %955 = vmatpush1.bf16.xpose.msra.mxu0 0
    %956 = vmatprep.subr.bf16.mxu0 0
    %957 = vmatpush1.bf16.xpose.msra.mxu0 0
    %958 = vmatprep.subr.bf16.mxu0 0
    %959 = vmatpush1.bf16.xpose.msra.mxu0 %v942
    %960 = vmatprep.subr.bf16.mxu0 0
    %961 = vmatpush2.bf16.xpose.msra.mxu0 0
    %962 = vmatprep.subr.bf16.mxu0 0
    %963 = vmatpush2.bf16.xpose.msra.mxu0 0
    %964 = vmatprep.subr.bf16.mxu0 0
    %965 = vmatpush2.bf16.xpose.msra.mxu0 0
    %966 = vmatprep.subr.bf16.mxu0 0
    %967 = vmatpush2.bf16.xpose.msra.mxu0 0
    %968 = vmatprep.subr.bf16.mxu0 0
    %969 = vmatpush2.bf16.xpose.msra.mxu0 0
    %970 = vmatprep.subr.bf16.mxu0 0
    %971 = vmatpush2.bf16.xpose.msra.mxu0 0
    %972 = vmatprep.subr.bf16.mxu0 0
    %973 = vmatpush2.bf16.xpose.msra.mxu0 0
    %974 = vmatprep.subr.bf16.mxu0 0
    %975 = vmatpush2.bf16.xpose.msra.mxu0 0
    %976 = vmatprep.mubr.bf16.mxu0 0
    %977 = vmatmul.mubr.bf16.gmra.mxu0 %v939
    %v978 = vpop.f32.mrf.mxu0
    %v979 = vadd.f32 %v135, %v978
    %v980 = vpop.f32.mrf.mxu0
    %v981 = vpop.f32.mrf.mxu0
    %v982 = vadd.f32 %v136, %v981
    %v983 = vpop.f32.mrf.mxu0
    %984 = vdwg.mxu0
    %v985 = vsel %vm472, %v979, -inf
    %986 = vmax.xlane.f32.xlu0 %v985
    %v987 = vpop.xlane.xlu0 %986
    %v988 = vsel %vm472, %v982, -inf
    %989 = vmax.xlane.f32.xlu0 %v988
    %v990 = vpop.xlane.xlu0 %989
    %v991 = vsub.f32 %v979, %v987
    %v992 = vsub.f32 %v982, %v990
    %v993 = vmul.f32 %v991, 1.442695
    %v994 = vpow.pop %v993
    %v995 = vmul.f32 %v992, 1.442695
    %v996 = vpow.pop %v995
    %v997 = vsel %vm472, %v994, 0.0
    %998 = vadd.xlane.f32.xlu0 %v997
    %v999 = vpop.xlane.xlu0 %998
    %v1000 = vsel %vm472, %v996, 0.0
    %1001 = vadd.xlane.f32.xlu0 %v1000
    %v1002 = vpop.xlane.xlu0 %1001
    %v1003 = vrcp.pop %v999
    %v1004 = vrcp.pop %v1002
    %v1005 = vmul.f32 %v994, %v1003
    %v1006 = vmul.f32 %v996, %v1004
    %v1007 = vpack.c.bf16 %v1006, %v1005
    %v1009 = vsel %vm472, %v1007, 0
    %1011 = vmatprep.subr.bf16.mxu0 0
    %1012 = vmatpush1.bf16.msra.mxu0 0
    %1013 = vmatprep.subr.bf16.mxu0 0
    %1014 = vmatpush1.bf16.msra.mxu0 0
    %1015 = vmatprep.subr.bf16.mxu0 0
    %1016 = vmatpush1.bf16.msra.mxu0 0
    %1017 = vmatprep.subr.bf16.mxu0 0
    %1018 = vmatpush1.bf16.msra.mxu0 0
    %1019 = vmatprep.subr.bf16.mxu0 0
    %1020 = vmatpush1.bf16.msra.mxu0 0
    %1021 = vmatprep.subr.bf16.mxu0 0
    %1022 = vmatpush1.bf16.msra.mxu0 0
    %1023 = vmatprep.subr.bf16.mxu0 0
    %1024 = vmatpush1.bf16.msra.mxu0 0
    %1025 = vmatprep.subr.bf16.mxu0 0
    %1026 = vmatpush1.bf16.msra.mxu0 %v423
    %1027 = vmatprep.subr.bf16.mxu0 0
    %1028 = vmatpush2.bf16.msra.mxu0 0
    %1029 = vmatprep.subr.bf16.mxu0 0
    %1030 = vmatpush2.bf16.msra.mxu0 0
    %1031 = vmatprep.subr.bf16.mxu0 0
    %1032 = vmatpush2.bf16.msra.mxu0 0
    %1033 = vmatprep.subr.bf16.mxu0 0
    %1034 = vmatpush2.bf16.msra.mxu0 0
    %1035 = vmatprep.subr.bf16.mxu0 0
    %1036 = vmatpush2.bf16.msra.mxu0 0
    %1037 = vmatprep.subr.bf16.mxu0 0
    %1038 = vmatpush2.bf16.msra.mxu0 0
    %1039 = vmatprep.subr.bf16.mxu0 0
    %1040 = vmatpush2.bf16.msra.mxu0 0
    %1041 = vmatprep.subr.bf16.mxu0 0
    %1042 = vmatpush2.bf16.msra.mxu0 0
    %1043 = vmatprep.mubr.bf16.mxu0 0
    %1044 = vmatmul.mubr.bf16.gmra.mxu0 %v1009
    %v1045 = vpop.f32.mrf.mxu0
    %v1046 = vadd.f32 0.0, %v1045
    %v1047 = vpop.f32.mrf.mxu0
    %v1048 = vpop.f32.mrf.mxu0
    %v1049 = vadd.f32 0.0, %v1048
    %v1050 = vpop.f32.mrf.mxu0
    %1051 = vdwg.mxu0
    %1053 = vrot.lane.b32.xlu0 %v419, 96
    %v1054 = vpop.permute.xlu0 %1053
    %1056 = vrot.lane.b32.xlu0 %v421, 96
    %v1057 = vpop.permute.xlu0 %1056
    %v1059 = vsel %vm424, %v1054, 0
    %v1062 = vsel %vm424, %v1057, 0
    %1064 = vmatprep.subr.bf16.mxu0 0
    %1065 = vmatpush1.bf16.xpose.msra.mxu0 0
    %1066 = vmatprep.subr.bf16.mxu0 0
    %1067 = vmatpush1.bf16.xpose.msra.mxu0 0
    %1068 = vmatprep.subr.bf16.mxu0 0
    %1069 = vmatpush1.bf16.xpose.msra.mxu0 0
    %1070 = vmatprep.subr.bf16.mxu0 0
    %1071 = vmatpush1.bf16.xpose.msra.mxu0 0
    %1072 = vmatprep.subr.bf16.mxu0 0
    %1073 = vmatpush1.bf16.xpose.msra.mxu0 0
    %1074 = vmatprep.subr.bf16.mxu0 0
    %1075 = vmatpush1.bf16.xpose.msra.mxu0 0
    %1076 = vmatprep.subr.bf16.mxu0 0
    %1077 = vmatpush1.bf16.xpose.msra.mxu0 0
    %1078 = vmatprep.subr.bf16.mxu0 0
    %1079 = vmatpush1.bf16.xpose.msra.mxu0 %v1062
    %1080 = vmatprep.subr.bf16.mxu0 0
    %1081 = vmatpush2.bf16.xpose.msra.mxu0 0
    %1082 = vmatprep.subr.bf16.mxu0 0
    %1083 = vmatpush2.bf16.xpose.msra.mxu0 0
    %1084 = vmatprep.subr.bf16.mxu0 0
    %1085 = vmatpush2.bf16.xpose.msra.mxu0 0
    %1086 = vmatprep.subr.bf16.mxu0 0
    %1087 = vmatpush2.bf16.xpose.msra.mxu0 0
    %1088 = vmatprep.subr.bf16.mxu0 0
    %1089 = vmatpush2.bf16.xpose.msra.mxu0 0
    %1090 = vmatprep.subr.bf16.mxu0 0
    %1091 = vmatpush2.bf16.xpose.msra.mxu0 0
    %1092 = vmatprep.subr.bf16.mxu0 0
    %1093 = vmatpush2.bf16.xpose.msra.mxu0 0
    %1094 = vmatprep.subr.bf16.mxu0 0
    %1095 = vmatpush2.bf16.xpose.msra.mxu0 0
    %1096 = vmatprep.mubr.bf16.mxu0 0
    %1097 = vmatmul.mubr.bf16.gmra.mxu0 %v1059
    %v1098 = vpop.f32.mrf.mxu0
    %v1099 = vadd.f32 %v135, %v1098
    %v1100 = vpop.f32.mrf.mxu0
    %v1101 = vpop.f32.mrf.mxu0
    %v1102 = vadd.f32 %v136, %v1101
    %v1103 = vpop.f32.mrf.mxu0
    %1104 = vdwg.mxu0
    %v1105 = vsel %vm472, %v1099, -inf
    %1106 = vmax.xlane.f32.xlu0 %v1105
    %v1107 = vpop.xlane.xlu0 %1106
    %v1108 = vsel %vm472, %v1102, -inf
    %1109 = vmax.xlane.f32.xlu0 %v1108
    %v1110 = vpop.xlane.xlu0 %1109
    %v1111 = vsub.f32 %v1099, %v1107
    %v1112 = vsub.f32 %v1102, %v1110
    %v1113 = vmul.f32 %v1111, 1.442695
    %v1114 = vpow.pop %v1113
    %v1115 = vmul.f32 %v1112, 1.442695
    %v1116 = vpow.pop %v1115
    %v1117 = vsel %vm472, %v1114, 0.0
    %1118 = vadd.xlane.f32.xlu0 %v1117
    %v1119 = vpop.xlane.xlu0 %1118
    %v1120 = vsel %vm472, %v1116, 0.0
    %1121 = vadd.xlane.f32.xlu0 %v1120
    %v1122 = vpop.xlane.xlu0 %1121
    %v1123 = vrcp.pop %v1119
    %v1124 = vrcp.pop %v1122
    %v1125 = vmul.f32 %v1114, %v1123
    %v1126 = vmul.f32 %v1116, %v1124
    %v1127 = vpack.c.bf16 %v1126, %v1125
    %1129 = vrot.lane.b32.xlu0 %v423, 96
    %v1130 = vpop.permute.xlu0 %1129
    %v1133 = vsel %vm472, %v1127, 0
    %1135 = vmatprep.subr.bf16.mxu0 0
    %1136 = vmatpush1.bf16.msra.mxu0 0
    %1137 = vmatprep.subr.bf16.mxu0 0
    %1138 = vmatpush1.bf16.msra.mxu0 0
    %1139 = vmatprep.subr.bf16.mxu0 0
    %1140 = vmatpush1.bf16.msra.mxu0 0
    %1141 = vmatprep.subr.bf16.mxu0 0
    %1142 = vmatpush1.bf16.msra.mxu0 0
    %1143 = vmatprep.subr.bf16.mxu0 0
    %1144 = vmatpush1.bf16.msra.mxu0 0
    %1145 = vmatprep.subr.bf16.mxu0 0
    %1146 = vmatpush1.bf16.msra.mxu0 0
    %1147 = vmatprep.subr.bf16.mxu0 0
    %1148 = vmatpush1.bf16.msra.mxu0 0
    %1149 = vmatprep.subr.bf16.mxu0 0
    %1150 = vmatpush1.bf16.msra.mxu0 %v1130
    %1151 = vmatprep.subr.bf16.mxu0 0
    %1152 = vmatpush2.bf16.msra.mxu0 0
    %1153 = vmatprep.subr.bf16.mxu0 0
    %1154 = vmatpush2.bf16.msra.mxu0 0
    %1155 = vmatprep.subr.bf16.mxu0 0
    %1156 = vmatpush2.bf16.msra.mxu0 0
    %1157 = vmatprep.subr.bf16.mxu0 0
    %1158 = vmatpush2.bf16.msra.mxu0 0
    %1159 = vmatprep.subr.bf16.mxu0 0
    %1160 = vmatpush2.bf16.msra.mxu0 0
    %1161 = vmatprep.subr.bf16.mxu0 0
    %1162 = vmatpush2.bf16.msra.mxu0 0
    %1163 = vmatprep.subr.bf16.mxu0 0
    %1164 = vmatpush2.bf16.msra.mxu0 0
    %1165 = vmatprep.subr.bf16.mxu0 0
    %1166 = vmatpush2.bf16.msra.mxu0 0
    %1167 = vmatprep.mubr.bf16.mxu0 0
    %1168 = vmatmul.mubr.bf16.gmra.mxu0 %v1133
    %v1169 = vpop.f32.mrf.mxu0
    %v1170 = vadd.f32 0.0, %v1169
    %v1171 = vpop.f32.mrf.mxu0
    %v1172 = vpop.f32.mrf.mxu0
    %v1173 = vadd.f32 0.0, %v1172
    %v1174 = vpop.f32.mrf.mxu0
    %1175 = vdwg.mxu0
    %1176 = vrot.lane.b32.xlu0 %v419, 64
    %v1177 = vpop.permute.xlu0 %1176
    %1178 = vrot.lane.b32.xlu0 %v421, 64
    %v1179 = vpop.permute.xlu0 %1178
    %v1181 = vsel %vm424, %v1177, 0
    %v1184 = vsel %vm424, %v1179, 0
    %1186 = vmatprep.subr.bf16.mxu0 0
    %1187 = vmatpush1.bf16.xpose.msra.mxu0 0
    %1188 = vmatprep.subr.bf16.mxu0 0
    %1189 = vmatpush1.bf16.xpose.msra.mxu0 0
    %1190 = vmatprep.subr.bf16.mxu0 0
    %1191 = vmatpush1.bf16.xpose.msra.mxu0 0
    %1192 = vmatprep.subr.bf16.mxu0 0
    %1193 = vmatpush1.bf16.xpose.msra.mxu0 0
    %1194 = vmatprep.subr.bf16.mxu0 0
    %1195 = vmatpush1.bf16.xpose.msra.mxu0 0
    %1196 = vmatprep.subr.bf16.mxu0 0
    %1197 = vmatpush1.bf16.xpose.msra.mxu0 0
    %1198 = vmatprep.subr.bf16.mxu0 0
    %1199 = vmatpush1.bf16.xpose.msra.mxu0 0
    %1200 = vmatprep.subr.bf16.mxu0 0
    %1201 = vmatpush1.bf16.xpose.msra.mxu0 %v1184
    %1202 = vmatprep.subr.bf16.mxu0 0
    %1203 = vmatpush2.bf16.xpose.msra.mxu0 0
    %1204 = vmatprep.subr.bf16.mxu0 0
    %1205 = vmatpush2.bf16.xpose.msra.mxu0 0
    %1206 = vmatprep.subr.bf16.mxu0 0
    %1207 = vmatpush2.bf16.xpose.msra.mxu0 0
    %1208 = vmatprep.subr.bf16.mxu0 0
    %1209 = vmatpush2.bf16.xpose.msra.mxu0 0
    %1210 = vmatprep.subr.bf16.mxu0 0
    %1211 = vmatpush2.bf16.xpose.msra.mxu0 0
    %1212 = vmatprep.subr.bf16.mxu0 0
    %1213 = vmatpush2.bf16.xpose.msra.mxu0 0
    %1214 = vmatprep.subr.bf16.mxu0 0
    %1215 = vmatpush2.bf16.xpose.msra.mxu0 0
    %1216 = vmatprep.subr.bf16.mxu0 0
    %1217 = vmatpush2.bf16.xpose.msra.mxu0 0
    %1218 = vmatprep.mubr.bf16.mxu0 0
    %1219 = vmatmul.mubr.bf16.gmra.mxu0 %v1181
    %v1220 = vpop.f32.mrf.mxu0
    %v1221 = vadd.f32 %v135, %v1220
    %v1222 = vpop.f32.mrf.mxu0
    %v1223 = vpop.f32.mrf.mxu0
    %v1224 = vadd.f32 %v136, %v1223
    %v1225 = vpop.f32.mrf.mxu0
    %1226 = vdwg.mxu0
    %v1227 = vsel %vm472, %v1221, -inf
    %1228 = vmax.xlane.f32.xlu0 %v1227
    %v1229 = vpop.xlane.xlu0 %1228
    %v1230 = vsel %vm472, %v1224, -inf
    %1231 = vmax.xlane.f32.xlu0 %v1230
    %v1232 = vpop.xlane.xlu0 %1231
    %v1233 = vsub.f32 %v1221, %v1229
    %v1234 = vsub.f32 %v1224, %v1232
    %v1235 = vmul.f32 %v1233, 1.442695
    %v1236 = vpow.pop %v1235
    %v1237 = vmul.f32 %v1234, 1.442695
    %v1238 = vpow.pop %v1237
    %v1239 = vsel %vm472, %v1236, 0.0
    %1240 = vadd.xlane.f32.xlu0 %v1239
    %v1241 = vpop.xlane.xlu0 %1240
    %v1242 = vsel %vm472, %v1238, 0.0
    %1243 = vadd.xlane.f32.xlu0 %v1242
    %v1244 = vpop.xlane.xlu0 %1243
    %v1245 = vrcp.pop %v1241
    %v1246 = vrcp.pop %v1244
    %v1247 = vmul.f32 %v1236, %v1245
    %v1248 = vmul.f32 %v1238, %v1246
    %v1249 = vpack.c.bf16 %v1248, %v1247
    %1250 = vrot.lane.b32.xlu0 %v423, 64
    %v1251 = vpop.permute.xlu0 %1250
    %v1254 = vsel %vm472, %v1249, 0
    %1256 = vmatprep.subr.bf16.mxu0 0
    %1257 = vmatpush1.bf16.msra.mxu0 0
    %1258 = vmatprep.subr.bf16.mxu0 0
    %1259 = vmatpush1.bf16.msra.mxu0 0
    %1260 = vmatprep.subr.bf16.mxu0 0
    %1261 = vmatpush1.bf16.msra.mxu0 0
    %1262 = vmatprep.subr.bf16.mxu0 0
    %1263 = vmatpush1.bf16.msra.mxu0 0
    %1264 = vmatprep.subr.bf16.mxu0 0
    %1265 = vmatpush1.bf16.msra.mxu0 0
    %1266 = vmatprep.subr.bf16.mxu0 0
    %1267 = vmatpush1.bf16.msra.mxu0 0
    %1268 = vmatprep.subr.bf16.mxu0 0
    %1269 = vmatpush1.bf16.msra.mxu0 0
    %1270 = vmatprep.subr.bf16.mxu0 0
    %1271 = vmatpush1.bf16.msra.mxu0 %v1251
    %1272 = vmatprep.subr.bf16.mxu0 0
    %1273 = vmatpush2.bf16.msra.mxu0 0
    %1274 = vmatprep.subr.bf16.mxu0 0
    %1275 = vmatpush2.bf16.msra.mxu0 0
    %1276 = vmatprep.subr.bf16.mxu0 0
    %1277 = vmatpush2.bf16.msra.mxu0 0
    %1278 = vmatprep.subr.bf16.mxu0 0
    %1279 = vmatpush2.bf16.msra.mxu0 0
    %1280 = vmatprep.subr.bf16.mxu0 0
    %1281 = vmatpush2.bf16.msra.mxu0 0
    %1282 = vmatprep.subr.bf16.mxu0 0
    %1283 = vmatpush2.bf16.msra.mxu0 0
    %1284 = vmatprep.subr.bf16.mxu0 0
    %1285 = vmatpush2.bf16.msra.mxu0 0
    %1286 = vmatprep.subr.bf16.mxu0 0
    %1287 = vmatpush2.bf16.msra.mxu0 0
    %1288 = vmatprep.mubr.bf16.mxu0 0
    %1289 = vmatmul.mubr.bf16.gmra.mxu0 %v1254
    %v1290 = vpop.f32.mrf.mxu0
    %v1291 = vadd.f32 0.0, %v1290
    %v1292 = vpop.f32.mrf.mxu0
    %v1293 = vpop.f32.mrf.mxu0
    %v1294 = vadd.f32 0.0, %v1293
    %v1295 = vpop.f32.mrf.mxu0
    %1296 = vdwg.mxu0
    %1297 = vrot.lane.b32.xlu0 %v419, 32
    %v1298 = vpop.permute.xlu0 %1297
    %1299 = vrot.lane.b32.xlu0 %v421, 32
    %v1300 = vpop.permute.xlu0 %1299
    %v1302 = vsel %vm424, %v1298, 0
    %v1305 = vsel %vm424, %v1300, 0
    %1307 = vmatprep.subr.bf16.mxu0 0
    %1308 = vmatpush1.bf16.xpose.msra.mxu0 0
    %1309 = vmatprep.subr.bf16.mxu0 0
    %1310 = vmatpush1.bf16.xpose.msra.mxu0 0
    %1311 = vmatprep.subr.bf16.mxu0 0
    %1312 = vmatpush1.bf16.xpose.msra.mxu0 0
    %1313 = vmatprep.subr.bf16.mxu0 0
    %1314 = vmatpush1.bf16.xpose.msra.mxu0 0
    %1315 = vmatprep.subr.bf16.mxu0 0
    %1316 = vmatpush1.bf16.xpose.msra.mxu0 0
    %1317 = vmatprep.subr.bf16.mxu0 0
    %1318 = vmatpush1.bf16.xpose.msra.mxu0 0
    %1319 = vmatprep.subr.bf16.mxu0 0
    %1320 = vmatpush1.bf16.xpose.msra.mxu0 0
    %1321 = vmatprep.subr.bf16.mxu0 0
    %1322 = vmatpush1.bf16.xpose.msra.mxu0 %v1305
    %1323 = vmatprep.subr.bf16.mxu0 0
    %1324 = vmatpush2.bf16.xpose.msra.mxu0 0
    %1325 = vmatprep.subr.bf16.mxu0 0
    %1326 = vmatpush2.bf16.xpose.msra.mxu0 0
    %1327 = vmatprep.subr.bf16.mxu0 0
    %1328 = vmatpush2.bf16.xpose.msra.mxu0 0
    %1329 = vmatprep.subr.bf16.mxu0 0
    %1330 = vmatpush2.bf16.xpose.msra.mxu0 0
    %1331 = vmatprep.subr.bf16.mxu0 0
    %1332 = vmatpush2.bf16.xpose.msra.mxu0 0
    %1333 = vmatprep.subr.bf16.mxu0 0
    %1334 = vmatpush2.bf16.xpose.msra.mxu0 0
    %1335 = vmatprep.subr.bf16.mxu0 0
    %1336 = vmatpush2.bf16.xpose.msra.mxu0 0
    %1337 = vmatprep.subr.bf16.mxu0 0
    %1338 = vmatpush2.bf16.xpose.msra.mxu0 0
    %1339 = vmatprep.mubr.bf16.mxu0 0
    %1340 = vmatmul.mubr.bf16.gmra.mxu0 %v1302
    %v1341 = vpop.f32.mrf.mxu0
    %v1342 = vadd.f32 %v135, %v1341
    %v1343 = vpop.f32.mrf.mxu0
    %v1344 = vpop.f32.mrf.mxu0
    %v1345 = vadd.f32 %v136, %v1344
    %v1346 = vpop.f32.mrf.mxu0
    %1347 = vdwg.mxu0
    %v1348 = vsel %vm472, %v1342, -inf
    %1349 = vmax.xlane.f32.xlu0 %v1348
    %v1350 = vpop.xlane.xlu0 %1349
    %v1351 = vsel %vm472, %v1345, -inf
    %1352 = vmax.xlane.f32.xlu0 %v1351
    %v1353 = vpop.xlane.xlu0 %1352
    %v1354 = vsub.f32 %v1342, %v1350
    %v1355 = vsub.f32 %v1345, %v1353
    %v1356 = vmul.f32 %v1354, 1.442695
    %v1357 = vpow.pop %v1356
    %v1358 = vmul.f32 %v1355, 1.442695
    %v1359 = vpow.pop %v1358
    %v1360 = vsel %vm472, %v1357, 0.0
    %1361 = vadd.xlane.f32.xlu0 %v1360
    %v1362 = vpop.xlane.xlu0 %1361
    %v1363 = vsel %vm472, %v1359, 0.0
    %1364 = vadd.xlane.f32.xlu0 %v1363
    %v1365 = vpop.xlane.xlu0 %1364
    %v1366 = vrcp.pop %v1362
    %v1367 = vrcp.pop %v1365
    %v1368 = vmul.f32 %v1357, %v1366
    %v1369 = vmul.f32 %v1359, %v1367
    %v1370 = vpack.c.bf16 %v1369, %v1368
    %1371 = vrot.lane.b32.xlu0 %v423, 32
    %v1372 = vpop.permute.xlu0 %1371
    %v1375 = vsel %vm472, %v1370, 0
    %1377 = vmatprep.subr.bf16.mxu0 0
    %1378 = vmatpush1.bf16.msra.mxu0 0
    %1379 = vmatprep.subr.bf16.mxu0 0
    %1380 = vmatpush1.bf16.msra.mxu0 0
    %1381 = vmatprep.subr.bf16.mxu0 0
    %1382 = vmatpush1.bf16.msra.mxu0 0
    %1383 = vmatprep.subr.bf16.mxu0 0
    %1384 = vmatpush1.bf16.msra.mxu0 0
    %1385 = vmatprep.subr.bf16.mxu0 0
    %1386 = vmatpush1.bf16.msra.mxu0 0
    %1387 = vmatprep.subr.bf16.mxu0 0
    %1388 = vmatpush1.bf16.msra.mxu0 0
    %1389 = vmatprep.subr.bf16.mxu0 0
    %1390 = vmatpush1.bf16.msra.mxu0 0
    %1391 = vmatprep.subr.bf16.mxu0 0
    %1392 = vmatpush1.bf16.msra.mxu0 %v1372
    %1393 = vmatprep.subr.bf16.mxu0 0
    %1394 = vmatpush2.bf16.msra.mxu0 0
    %1395 = vmatprep.subr.bf16.mxu0 0
    %1396 = vmatpush2.bf16.msra.mxu0 0
    %1397 = vmatprep.subr.bf16.mxu0 0
    %1398 = vmatpush2.bf16.msra.mxu0 0
    %1399 = vmatprep.subr.bf16.mxu0 0
    %1400 = vmatpush2.bf16.msra.mxu0 0
    %1401 = vmatprep.subr.bf16.mxu0 0
    %1402 = vmatpush2.bf16.msra.mxu0 0
    %1403 = vmatprep.subr.bf16.mxu0 0
    %1404 = vmatpush2.bf16.msra.mxu0 0
    %1405 = vmatprep.subr.bf16.mxu0 0
    %1406 = vmatpush2.bf16.msra.mxu0 0
    %1407 = vmatprep.subr.bf16.mxu0 0
    %1408 = vmatpush2.bf16.msra.mxu0 0
    %1409 = vmatprep.mubr.bf16.mxu0 0
    %1410 = vmatmul.mubr.bf16.gmra.mxu0 %v1375
    %v1411 = vpop.f32.mrf.mxu0
    %v1412 = vadd.f32 0.0, %v1411
    %v1413 = vpop.f32.mrf.mxu0
    %v1414 = vpop.f32.mrf.mxu0
    %v1415 = vadd.f32 0.0, %v1414
    %v1416 = vpop.f32.mrf.mxu0
    %1417 = vdwg.mxu0
    %1420 = vrot.lane.b32.xlu0 %v1170, 32
    %v1421 = vpop.permute.xlu0 %1420
    %1422 = vrot.lane.b32.xlu0 %v1173, 32
    %v1423 = vpop.permute.xlu0 %1422
    %1428 = vrot.lane.b32.xlu0 %v1291, 64
    %v1429 = vpop.permute.xlu0 %1428
    %1430 = vrot.lane.b32.xlu0 %v1294, 64
    %v1431 = vpop.permute.xlu0 %1430
    %1436 = vrot.lane.b32.xlu0 %v1412, 96
    %v1437 = vpop.permute.xlu0 %1436
    %1438 = vrot.lane.b32.xlu0 %v1415, 96
    %v1439 = vpop.permute.xlu0 %1438
    %v1442 = vsel %vm424, %v1046, %v1421
    %v1443 = vsel %vm424, %v1049, %v1423
    %v1444 = vsel %vm932, %v1442, %v1429
    %v1445 = vsel %vm932, %v1443, %v1431
    %v1446 = vsel %vm935, %v1444, %v1437
    %v1447 = vsel %vm935, %v1445, %v1439
    %v1448 = vpack.c.bf16 %v937, %v936
    %v1449 = vpack.c.bf16 %v1447, %v1446
    %v1450 = vld [vmem:[#allocation8] sm:$0xf]
    %v1451 = vld [vmem:[#allocation8 + $0x4] sm:$0xf]
    %v1452 = vld [vmem:[#allocation8 + $0x8] sm:$0xf]
    %v1453 = vld [vmem:[#allocation8 + $0xc] sm:$0xf]
    %v1454 = vld [vmem:[#allocation8 + $0x10] sm:$0xf]
    %v1455 = vld [vmem:[#allocation8 + $0x14] sm:$0xf]
    %v1456 = vld [vmem:[#allocation8 + $0x18] sm:$0xf]
    %v1457 = vld [vmem:[#allocation8 + $0x1c] sm:$0xf]
    %v1458 = vld [vmem:[#allocation8 + $0x20] sm:$0xf]
    %v1459 = vld [vmem:[#allocation8 + $0x24] sm:$0xf]
    %v1460 = vld [vmem:[#allocation8 + $0x28] sm:$0xf]
    %v1461 = vld [vmem:[#allocation8 + $0x2c] sm:$0xf]
    %v1462 = vld [vmem:[#allocation8 + $0x30] sm:$0xf]
    %v1463 = vld [vmem:[#allocation8 + $0x34] sm:$0xf]
    %v1464 = vld [vmem:[#allocation8 + $0x38] sm:$0xf]
    %v1465 = vld [vmem:[#allocation8 + $0x3c] sm:$0xf]
    %v1466 = vld [vmem:[%s5] sm:$0x1]
    %v1468 = vlaneseq
    %v1469 = vshrl.u32 %v1468, 7
    %v1470 = vsub.s32 0, %v1469
    %v1471 = vrot.slane %v1466, %v1470
    %v1489 = vunpack.c.l.b16 %v1450
    %v1490 = vunpack.c.l.b16 %v1451
    %v1491 = vunpack.c.l.b16 %v1452
    %v1492 = vunpack.c.l.b16 %v1453
    %v1493 = vunpack.c.l.b16 %v1454
    %v1494 = vunpack.c.l.b16 %v1455
    %v1495 = vunpack.c.l.b16 %v1456
    %v1496 = vunpack.c.l.b16 %v1457
    %v1497 = vunpack.c.l.b16 %v1458
    %v1498 = vunpack.c.l.b16 %v1459
    %v1499 = vunpack.c.l.b16 %v1460
    %v1500 = vunpack.c.l.b16 %v1461
    %v1501 = vunpack.c.l.b16 %v1462
    %v1502 = vunpack.c.l.b16 %v1463
    %v1503 = vunpack.c.l.b16 %v1464
    %v1504 = vunpack.c.l.b16 %v1465
    %v1505 = vpack.c.b16 %v1490, %v1489
    %v1506 = vpack.c.b16 %v1492, %v1491
    %v1507 = vpack.c.b16 %v1494, %v1493
    %v1508 = vpack.c.b16 %v1496, %v1495
    %v1509 = vpack.c.b16 %v1498, %v1497
    %v1510 = vpack.c.b16 %v1500, %v1499
    %v1511 = vpack.c.b16 %v1502, %v1501
    %v1512 = vpack.c.b16 %v1504, %v1503
    %1521 = vmatprep.subr.bf16.mxu0 0
    %1522 = vmatpush1.bf16.msra.mxu0 %v1512
    %1523 = vmatprep.subr.bf16.mxu0 0
    %1524 = vmatpush1.bf16.msra.mxu0 %v1511
    %1525 = vmatprep.subr.bf16.mxu0 0
    %1526 = vmatpush1.bf16.msra.mxu0 %v1510
    %1527 = vmatprep.subr.bf16.mxu0 0
    %1528 = vmatpush1.bf16.msra.mxu0 %v1509
    %1529 = vmatprep.subr.bf16.mxu0 0
    %1530 = vmatpush1.bf16.msra.mxu0 %v1508
    %1531 = vmatprep.subr.bf16.mxu0 0
    %1532 = vmatpush1.bf16.msra.mxu0 %v1507
    %1533 = vmatprep.subr.bf16.mxu0 0
    %1534 = vmatpush1.bf16.msra.mxu0 %v1506
    %1535 = vmatprep.subr.bf16.mxu0 0
    %1536 = vmatpush1.bf16.msra.mxu0 %v1505
    %1537 = vmatprep.subr.bf16.mxu0 0
    %1538 = vmatpush2.bf16.msra.mxu0 0
    %1539 = vmatprep.subr.bf16.mxu0 0
    %1540 = vmatpush2.bf16.msra.mxu0 0
    %1541 = vmatprep.subr.bf16.mxu0 0
    %1542 = vmatpush2.bf16.msra.mxu0 0
    %1543 = vmatprep.subr.bf16.mxu0 0
    %1544 = vmatpush2.bf16.msra.mxu0 0
    %1545 = vmatprep.subr.bf16.mxu0 0
    %1546 = vmatpush2.bf16.msra.mxu0 0
    %1547 = vmatprep.subr.bf16.mxu0 0
    %1548 = vmatpush2.bf16.msra.mxu0 0
    %1549 = vmatprep.subr.bf16.mxu0 0
    %1550 = vmatpush2.bf16.msra.mxu0 0
    %1551 = vmatprep.subr.bf16.mxu0 0
    %1552 = vmatpush2.bf16.msra.mxu0 0
    %1553 = vmatprep.mubr.bf16.mxu0 0
    %1554 = vmatmul.mubr.bf16.gmra.mxu0 %v1448
    %v1555 = vpop.f32.mrf.mxu0
    %v1556 = vadd.f32 %v1471, %v1555
    %v1557 = vpop.f32.mrf.mxu0
    %v1558 = vpop.f32.mrf.mxu0
    %v1559 = vadd.f32 %v1471, %v1558
    %v1560 = vpop.f32.mrf.mxu0
    %1561 = vmatprep.mubr.bf16.mxu0 0
    %1562 = vmatmul.mubr.bf16.gmra.mxu0 %v1449
    %v1563 = vpop.f32.mrf.mxu0
    %v1564 = vadd.f32 %v1471, %v1563
    %v1565 = vpop.f32.mrf.mxu0
    %v1566 = vpop.f32.mrf.mxu0
    %v1567 = vadd.f32 %v1471, %v1566
    %v1568 = vpop.f32.mrf.mxu0
    %1569 = vdwg.mxu0
    %v1570 = vadd.f32 %v1556, %v131
    %v1571 = vadd.f32 %v1559, %v132
    %v1572 = vadd.f32 %v1564, %v133
    %v1573 = vadd.f32 %v1567, %v134
    %1574 = vadd.xlane.f32.xlu0 %v1570
    %v1575 = vpop.xlane.xlu0 %1574
    %1576 = vadd.xlane.f32.xlu0 %v1571
    %v1577 = vpop.xlane.xlu0 %1576
    %1578 = vadd.xlane.f32.xlu0 %v1572
    %v1579 = vpop.xlane.xlu0 %1578
    %1580 = vadd.xlane.f32.xlu0 %v1573
    %v1581 = vpop.xlane.xlu0 %1580
    %v1582 = vrcp.pop 128.0
    %v1583 = vmul.f32 %v1575, %v1582
    %v1584 = vmul.f32 %v1577, %v1582
    %v1585 = vmul.f32 %v1579, %v1582
    %v1586 = vmul.f32 %v1581, %v1582
    %v1587 = vsub.f32 %v1570, %v1583
    %v1588 = vsub.f32 %v1571, %v1584
    %v1589 = vsub.f32 %v1572, %v1585
    %v1590 = vsub.f32 %v1573, %v1586
    %v1591 = vmul.f32 %v1587, %v1587
    %v1592 = vmul.f32 %v1588, %v1588
    %v1593 = vmul.f32 %v1589, %v1589
    %v1594 = vmul.f32 %v1590, %v1590
    %1595 = vadd.xlane.f32.xlu0 %v1591
    %v1596 = vpop.xlane.xlu0 %1595
    %1597 = vadd.xlane.f32.xlu0 %v1592
    %v1598 = vpop.xlane.xlu0 %1597
    %1599 = vadd.xlane.f32.xlu0 %v1593
    %v1600 = vpop.xlane.xlu0 %1599
    %1601 = vadd.xlane.f32.xlu0 %v1594
    %v1602 = vpop.xlane.xlu0 %1601
    %v1603 = vmul.f32 %v1596, %v1582
    %v1604 = vmul.f32 %v1598, %v1582
    %v1605 = vmul.f32 %v1600, %v1582
    %v1606 = vmul.f32 %v1602, %v1582
    %v1607 = vadd.f32 %v1603, 1e-05
    %v1608 = vadd.f32 %v1604, 1e-05
    %v1609 = vadd.f32 %v1605, 1e-05
    %v1610 = vadd.f32 %v1606, 1e-05
    %v1611 = vrsqrt.pop %v1607
    %v1612 = vrsqrt.pop %v1608
    %v1613 = vrsqrt.pop %v1609
    %v1614 = vrsqrt.pop %v1610
    %v1615 = vmul.f32 %v1587, %v1611
    %v1616 = vmul.f32 %v1588, %v1612
    %v1617 = vmul.f32 %v1589, %v1613
    %v1618 = vmul.f32 %v1590, %v1614
    %v1619 = vld [vmem:[%s6] sm:$0x1]
    %v1621 = vlaneseq
    %v1622 = vshrl.u32 %v1621, 7
    %v1623 = vsub.s32 0, %v1622
    %v1624 = vrot.slane %v1619, %v1623
    %v1626 = vmul.f32 %v1615, %v1624
    %v1627 = vmul.f32 %v1616, %v1624
    %v1628 = vmul.f32 %v1617, %v1624
    %v1629 = vmul.f32 %v1618, %v1624
    %v1630 = vld [vmem:[%s7] sm:$0x1]
    %v1632 = vlaneseq
    %v1633 = vshrl.u32 %v1632, 7
    %v1634 = vsub.s32 0, %v1633
    %v1635 = vrot.slane %v1630, %v1634
    %v1637 = vadd.f32 %v1626, %v1635
    %v1638 = vadd.f32 %v1627, %v1635
    %v1639 = vadd.f32 %v1628, %v1635
    %v1640 = vadd.f32 %v1629, %v1635
    %v1641 = vpack.c.bf16 %v1638, %v1637
    %v1642 = vpack.c.bf16 %v1640, %v1639
    %v1643 = vld [vmem:[#allocation10] sm:$0xff]
    %v1644 = vld [vmem:[#allocation10 + $0x8] sm:$0xff]
    %v1645 = vld [vmem:[#allocation10 + $0x10] sm:$0xff]
    %v1646 = vld [vmem:[#allocation10 + $0x18] sm:$0xff]
    %v1647 = vld [vmem:[#allocation10 + $0x20] sm:$0xff]
    %v1648 = vld [vmem:[#allocation10 + $0x28] sm:$0xff]
    %v1649 = vld [vmem:[#allocation10 + $0x30] sm:$0xff]
    %v1650 = vld [vmem:[#allocation10 + $0x38] sm:$0xff]
    %v1651 = vld [vmem:[#allocation10 + $0x40] sm:$0xff]
    %v1652 = vld [vmem:[#allocation10 + $0x48] sm:$0xff]
    %v1653 = vld [vmem:[#allocation10 + $0x50] sm:$0xff]
    %v1654 = vld [vmem:[#allocation10 + $0x58] sm:$0xff]
    %v1655 = vld [vmem:[#allocation10 + $0x60] sm:$0xff]
    %v1656 = vld [vmem:[#allocation10 + $0x68] sm:$0xff]
    %v1657 = vld [vmem:[#allocation10 + $0x70] sm:$0xff]
    %v1658 = vld [vmem:[#allocation10 + $0x78] sm:$0xff]
    %v1659 = vld [vmem:[#allocation10 + $0x80] sm:$0xff]
    %v1660 = vld [vmem:[#allocation10 + $0x88] sm:$0xff]
    %v1661 = vld [vmem:[#allocation10 + $0x90] sm:$0xff]
    %v1662 = vld [vmem:[#allocation10 + $0x98] sm:$0xff]
    %v1663 = vld [vmem:[#allocation10 + $0xa0] sm:$0xff]
    %v1664 = vld [vmem:[#allocation10 + $0xa8] sm:$0xff]
    %v1665 = vld [vmem:[#allocation10 + $0xb0] sm:$0xff]
    %v1666 = vld [vmem:[#allocation10 + $0xb8] sm:$0xff]
    %v1667 = vld [vmem:[#allocation10 + $0xc0] sm:$0xff]
    %v1668 = vld [vmem:[#allocation10 + $0xc8] sm:$0xff]
    %v1669 = vld [vmem:[#allocation10 + $0xd0] sm:$0xff]
    %v1670 = vld [vmem:[#allocation10 + $0xd8] sm:$0xff]
    %v1671 = vld [vmem:[#allocation10 + $0xe0] sm:$0xff]
    %v1672 = vld [vmem:[#allocation10 + $0xe8] sm:$0xff]
    %v1673 = vld [vmem:[#allocation10 + $0xf0] sm:$0xff]
    %v1674 = vld [vmem:[#allocation10 + $0xf8] sm:$0xff]
    %v1675 = vld [vmem:[%s11] sm:$0xf]
    %v1677 = vlaneseq
    %v1678 = vshrl.u32 %v1677, 7
    %v1679 = vsub.s32 0, %v1678
    %v1680 = vrot.slane %v1675, %v1679
    %v1681 = vlaneseq
    %v1682 = vshrl.u32 %v1681, 7
    %v1683 = vsub.s32 1, %v1682
    %v1684 = vrot.slane %v1675, %v1683
    %v1685 = vlaneseq
    %v1686 = vshrl.u32 %v1685, 7
    %v1687 = vsub.s32 2, %v1686
    %v1688 = vrot.slane %v1675, %v1687
    %v1689 = vlaneseq
    %v1690 = vshrl.u32 %v1689, 7
    %v1691 = vsub.s32 3, %v1690
    %v1692 = vrot.slane %v1675, %v1691
    %v1729 = vunpack.c.l.b16 %v1643
    %v1730 = vunpack.c.h.b16 %v1643
    %v1731 = vunpack.c.l.b16 %v1644
    %v1732 = vunpack.c.h.b16 %v1644
    %v1733 = vunpack.c.l.b16 %v1645
    %v1734 = vunpack.c.h.b16 %v1645
    %v1735 = vunpack.c.l.b16 %v1646
    %v1736 = vunpack.c.h.b16 %v1646
    %v1737 = vunpack.c.l.b16 %v1647
    %v1738 = vunpack.c.h.b16 %v1647
    %v1739 = vunpack.c.l.b16 %v1648
    %v1740 = vunpack.c.h.b16 %v1648
    %v1741 = vunpack.c.l.b16 %v1649
    %v1742 = vunpack.c.h.b16 %v1649
    %v1743 = vunpack.c.l.b16 %v1650
    %v1744 = vunpack.c.h.b16 %v1650
    %v1745 = vunpack.c.l.b16 %v1651
    %v1746 = vunpack.c.h.b16 %v1651
    %v1747 = vunpack.c.l.b16 %v1652
    %v1748 = vunpack.c.h.b16 %v1652
    %v1749 = vunpack.c.l.b16 %v1653
    %v1750 = vunpack.c.h.b16 %v1653
    %v1751 = vunpack.c.l.b16 %v1654
    %v1752 = vunpack.c.h.b16 %v1654
    %v1753 = vunpack.c.l.b16 %v1655
    %v1754 = vunpack.c.h.b16 %v1655
    %v1755 = vunpack.c.l.b16 %v1656
    %v1756 = vunpack.c.h.b16 %v1656
    %v1757 = vunpack.c.l.b16 %v1657
    %v1758 = vunpack.c.h.b16 %v1657
    %v1759 = vunpack.c.l.b16 %v1658
    %v1760 = vunpack.c.h.b16 %v1658
    %v1761 = vunpack.c.l.b16 %v1659
    %v1762 = vunpack.c.h.b16 %v1659
    %v1763 = vunpack.c.l.b16 %v1660
    %v1764 = vunpack.c.h.b16 %v1660
    %v1765 = vunpack.c.l.b16 %v1661
    %v1766 = vunpack.c.h.b16 %v1661
    %v1767 = vunpack.c.l.b16 %v1662
    %v1768 = vunpack.c.h.b16 %v1662
    %v1769 = vunpack.c.l.b16 %v1663
    %v1770 = vunpack.c.h.b16 %v1663
    %v1771 = vunpack.c.l.b16 %v1664
    %v1772 = vunpack.c.h.b16 %v1664
    %v1773 = vunpack.c.l.b16 %v1665
    %v1774 = vunpack.c.h.b16 %v1665
    %v1775 = vunpack.c.l.b16 %v1666
    %v1776 = vunpack.c.h.b16 %v1666
    %v1777 = vunpack.c.l.b16 %v1667
    %v1778 = vunpack.c.h.b16 %v1667
    %v1779 = vunpack.c.l.b16 %v1668
    %v1780 = vunpack.c.h.b16 %v1668
    %v1781 = vunpack.c.l.b16 %v1669
    %v1782 = vunpack.c.h.b16 %v1669
    %v1783 = vunpack.c.l.b16 %v1670
    %v1784 = vunpack.c.h.b16 %v1670
    %v1785 = vunpack.c.l.b16 %v1671
    %v1786 = vunpack.c.h.b16 %v1671
    %v1787 = vunpack.c.l.b16 %v1672
    %v1788 = vunpack.c.h.b16 %v1672
    %v1789 = vunpack.c.l.b16 %v1673
    %v1790 = vunpack.c.h.b16 %v1673
    %v1791 = vunpack.c.l.b16 %v1674
    %v1792 = vunpack.c.h.b16 %v1674
    %v1793 = vpack.c.b16 %v1733, %v1729
    %v1794 = vpack.c.b16 %v1734, %v1730
    %v1795 = vpack.c.b16 %v1735, %v1731
    %v1796 = vpack.c.b16 %v1736, %v1732
    %v1797 = vpack.c.b16 %v1741, %v1737
    %v1798 = vpack.c.b16 %v1742, %v1738
    %v1799 = vpack.c.b16 %v1743, %v1739
    %v1800 = vpack.c.b16 %v1744, %v1740
    %v1801 = vpack.c.b16 %v1749, %v1745
    %v1802 = vpack.c.b16 %v1750, %v1746
    %v1803 = vpack.c.b16 %v1751, %v1747
    %v1804 = vpack.c.b16 %v1752, %v1748
    %v1805 = vpack.c.b16 %v1757, %v1753
    %v1806 = vpack.c.b16 %v1758, %v1754
    %v1807 = vpack.c.b16 %v1759, %v1755
    %v1808 = vpack.c.b16 %v1760, %v1756
    %v1809 = vpack.c.b16 %v1765, %v1761
    %v1810 = vpack.c.b16 %v1766, %v1762
    %v1811 = vpack.c.b16 %v1767, %v1763
    %v1812 = vpack.c.b16 %v1768, %v1764
    %v1813 = vpack.c.b16 %v1773, %v1769
    %v1814 = vpack.c.b16 %v1774, %v1770
    %v1815 = vpack.c.b16 %v1775, %v1771
    %v1816 = vpack.c.b16 %v1776, %v1772
    %v1817 = vpack.c.b16 %v1781, %v1777
    %v1818 = vpack.c.b16 %v1782, %v1778
    %v1819 = vpack.c.b16 %v1783, %v1779
    %v1820 = vpack.c.b16 %v1784, %v1780
    %v1821 = vpack.c.b16 %v1789, %v1785
    %v1822 = vpack.c.b16 %v1790, %v1786
    %v1823 = vpack.c.b16 %v1791, %v1787
    %v1824 = vpack.c.b16 %v1792, %v1788
    %1857 = vmatprep.subr.bf16.mxu0 %v1822
    %1858 = vmatpush1.bf16.msra.mxu0 %v1821
    %1859 = vmatprep.subr.bf16.mxu0 %v1818
    %1860 = vmatpush1.bf16.msra.mxu0 %v1817
    %1861 = vmatprep.subr.bf16.mxu0 %v1814
    %1862 = vmatpush1.bf16.msra.mxu0 %v1813
    %1863 = vmatprep.subr.bf16.mxu0 %v1810
    %1864 = vmatpush1.bf16.msra.mxu0 %v1809
    %1865 = vmatprep.subr.bf16.mxu0 %v1806
    %1866 = vmatpush1.bf16.msra.mxu0 %v1805
    %1867 = vmatprep.subr.bf16.mxu0 %v1802
    %1868 = vmatpush1.bf16.msra.mxu0 %v1801
    %1869 = vmatprep.subr.bf16.mxu0 %v1798
    %1870 = vmatpush1.bf16.msra.mxu0 %v1797
    %1871 = vmatprep.subr.bf16.mxu0 %v1794
    %1872 = vmatpush1.bf16.msra.mxu0 %v1793
    %1873 = vmatprep.subr.bf16.mxu0 0
    %1874 = vmatpush2.bf16.msra.mxu0 0
    %1875 = vmatprep.subr.bf16.mxu0 0
    %1876 = vmatpush2.bf16.msra.mxu0 0
    %1877 = vmatprep.subr.bf16.mxu0 0
    %1878 = vmatpush2.bf16.msra.mxu0 0
    %1879 = vmatprep.subr.bf16.mxu0 0
    %1880 = vmatpush2.bf16.msra.mxu0 0
    %1881 = vmatprep.subr.bf16.mxu0 0
    %1882 = vmatpush2.bf16.msra.mxu0 0
    %1883 = vmatprep.subr.bf16.mxu0 0
    %1884 = vmatpush2.bf16.msra.mxu0 0
    %1885 = vmatprep.subr.bf16.mxu0 0
    %1886 = vmatpush2.bf16.msra.mxu0 0
    %1887 = vmatprep.subr.bf16.mxu0 0
    %1888 = vmatpush2.bf16.msra.mxu0 0
    %1889 = vmatprep.mubr.bf16.mxu0 0
    %1890 = vmatmul.mubr.bf16.gmra.mxu0 %v1641
    %v1891 = vpop.f32.mrf.mxu0
    %v1892 = vadd.f32 %v1680, %v1891
    %v1893 = vpop.f32.mrf.mxu0
    %v1894 = vadd.f32 %v1684, %v1893
    %v1895 = vpop.f32.mrf.mxu0
    %v1896 = vadd.f32 %v1680, %v1895
    %v1897 = vpop.f32.mrf.mxu0
    %v1898 = vadd.f32 %v1684, %v1897
    %1899 = vmatprep.mubr.bf16.mxu0 0
    %1900 = vmatmul.mubr.bf16.gmra.mxu0 %v1642
    %v1901 = vpop.f32.mrf.mxu0
    %v1902 = vadd.f32 %v1680, %v1901
    %v1903 = vpop.f32.mrf.mxu0
    %v1904 = vadd.f32 %v1684, %v1903
    %v1905 = vpop.f32.mrf.mxu0
    %v1906 = vadd.f32 %v1680, %v1905
    %v1907 = vpop.f32.mrf.mxu0
    %v1908 = vadd.f32 %v1684, %v1907
    %1909 = vdwg.mxu0
    %1910 = vmatprep.subr.bf16.mxu0 %v1824
    %1911 = vmatpush1.bf16.msra.mxu0 %v1823
    %1912 = vmatprep.subr.bf16.mxu0 %v1820
    %1913 = vmatpush1.bf16.msra.mxu0 %v1819
    %1914 = vmatprep.subr.bf16.mxu0 %v1816
    %1915 = vmatpush1.bf16.msra.mxu0 %v1815
    %1916 = vmatprep.subr.bf16.mxu0 %v1812
    %1917 = vmatpush1.bf16.msra.mxu0 %v1811
    %1918 = vmatprep.subr.bf16.mxu0 %v1808
    %1919 = vmatpush1.bf16.msra.mxu0 %v1807
    %1920 = vmatprep.subr.bf16.mxu0 %v1804
    %1921 = vmatpush1.bf16.msra.mxu0 %v1803
    %1922 = vmatprep.subr.bf16.mxu0 %v1800
    %1923 = vmatpush1.bf16.msra.mxu0 %v1799
    %1924 = vmatprep.subr.bf16.mxu0 %v1796
    %1925 = vmatpush1.bf16.msra.mxu0 %v1795
    %1926 = vmatprep.subr.bf16.mxu0 0
    %1927 = vmatpush2.bf16.msra.mxu0 0
    %1928 = vmatprep.subr.bf16.mxu0 0
    %1929 = vmatpush2.bf16.msra.mxu0 0
    %1930 = vmatprep.subr.bf16.mxu0 0
    %1931 = vmatpush2.bf16.msra.mxu0 0
    %1932 = vmatprep.subr.bf16.mxu0 0
    %1933 = vmatpush2.bf16.msra.mxu0 0
    %1934 = vmatprep.subr.bf16.mxu0 0
    %1935 = vmatpush2.bf16.msra.mxu0 0
    %1936 = vmatprep.subr.bf16.mxu0 0
    %1937 = vmatpush2.bf16.msra.mxu0 0
    %1938 = vmatprep.subr.bf16.mxu0 0
    %1939 = vmatpush2.bf16.msra.mxu0 0
    %1940 = vmatprep.subr.bf16.mxu0 0
    %1941 = vmatpush2.bf16.msra.mxu0 0
    %1942 = vmatprep.mubr.bf16.mxu0 0
    %1943 = vmatmul.mubr.bf16.gmra.mxu0 %v1641
    %v1944 = vpop.f32.mrf.mxu0
    %v1945 = vadd.f32 %v1688, %v1944
    %v1946 = vpop.f32.mrf.mxu0
    %v1947 = vadd.f32 %v1692, %v1946
    %v1948 = vpop.f32.mrf.mxu0
    %v1949 = vadd.f32 %v1688, %v1948
    %v1950 = vpop.f32.mrf.mxu0
    %v1951 = vadd.f32 %v1692, %v1950
    %1952 = vmatprep.mubr.bf16.mxu0 0
    %1953 = vmatmul.mubr.bf16.gmra.mxu0 %v1642
    %v1954 = vpop.f32.mrf.mxu0
    %v1955 = vadd.f32 %v1688, %v1954
    %v1956 = vpop.f32.mrf.mxu0
    %v1957 = vadd.f32 %v1692, %v1956
    %v1958 = vpop.f32.mrf.mxu0
    %v1959 = vadd.f32 %v1688, %v1958
    %v1960 = vpop.f32.mrf.mxu0
    %v1961 = vadd.f32 %v1692, %v1960
    %1962 = vdwg.mxu0
    %v1963 = vmul.f32 %v1892, 0.5
    %v1964 = vmul.f32 %v1894, 0.5
    %v1965 = vmul.f32 %v1945, 0.5
    %v1966 = vmul.f32 %v1947, 0.5
    %v1967 = vmul.f32 %v1896, 0.5
    %v1968 = vmul.f32 %v1898, 0.5
    %v1969 = vmul.f32 %v1949, 0.5
    %v1970 = vmul.f32 %v1951, 0.5
    %v1971 = vmul.f32 %v1902, 0.5
    %v1972 = vmul.f32 %v1904, 0.5
    %v1973 = vmul.f32 %v1955, 0.5
    %v1974 = vmul.f32 %v1957, 0.5
    %v1975 = vmul.f32 %v1906, 0.5
    %v1976 = vmul.f32 %v1908, 0.5
    %v1977 = vmul.f32 %v1959, 0.5
    %v1978 = vmul.f32 %v1961, 0.5
    %v1979 = vmul.f32 %v1892, 0.70710677
    %v1980 = vmul.f32 %v1894, 0.70710677
    %v1981 = vmul.f32 %v1945, 0.70710677
    %v1982 = vmul.f32 %v1947, 0.70710677
    %v1983 = vmul.f32 %v1896, 0.70710677
    %v1984 = vmul.f32 %v1898, 0.70710677
    %v1985 = vmul.f32 %v1949, 0.70710677
    %v1986 = vmul.f32 %v1951, 0.70710677
    %v1987 = vmul.f32 %v1902, 0.70710677
    %v1988 = vmul.f32 %v1904, 0.70710677
    %v1989 = vmul.f32 %v1955, 0.70710677
    %v1990 = vmul.f32 %v1957, 0.70710677
    %v1991 = vmul.f32 %v1906, 0.70710677
    %v1992 = vmul.f32 %v1908, 0.70710677
    %v1993 = vmul.f32 %v1959, 0.70710677
    %v1994 = vmul.f32 %v1961, 0.70710677
    %v1995 = verf.f32.pop %v1979
    %v1996 = verf.f32.pop %v1980
    %v1997 = verf.f32.pop %v1981
    %v1998 = verf.f32.pop %v1982
    %v1999 = verf.f32.pop %v1983
    %v2000 = verf.f32.pop %v1984
    %v2001 = verf.f32.pop %v1985
    %v2002 = verf.f32.pop %v1986
    %v2003 = verf.f32.pop %v1987
    %v2004 = verf.f32.pop %v1988
    %v2005 = verf.f32.pop %v1989
    %v2006 = verf.f32.pop %v1990
    %v2007 = verf.f32.pop %v1991
    %v2008 = verf.f32.pop %v1992
    %v2009 = verf.f32.pop %v1993
    %v2010 = verf.f32.pop %v1994
    %v2011 = vadd.f32 %v1995, 1.0
    %v2012 = vadd.f32 %v1996, 1.0
    %v2013 = vadd.f32 %v1997, 1.0
    %v2014 = vadd.f32 %v1998, 1.0
    %v2015 = vadd.f32 %v1999, 1.0
    %v2016 = vadd.f32 %v2000, 1.0
    %v2017 = vadd.f32 %v2001, 1.0
    %v2018 = vadd.f32 %v2002, 1.0
    %v2019 = vadd.f32 %v2003, 1.0
    %v2020 = vadd.f32 %v2004, 1.0
    %v2021 = vadd.f32 %v2005, 1.0
    %v2022 = vadd.f32 %v2006, 1.0
    %v2023 = vadd.f32 %v2007, 1.0
    %v2024 = vadd.f32 %v2008, 1.0
    %v2025 = vadd.f32 %v2009, 1.0
    %v2026 = vadd.f32 %v2010, 1.0
    %v2027 = vmul.f32 %v1963, %v2011
    %v2028 = vmul.f32 %v1964, %v2012
    %v2029 = vmul.f32 %v1965, %v2013
    %v2030 = vmul.f32 %v1966, %v2014
    %v2031 = vmul.f32 %v1967, %v2015
    %v2032 = vmul.f32 %v1968, %v2016
    %v2033 = vmul.f32 %v1969, %v2017
    %v2034 = vmul.f32 %v1970, %v2018
    %v2035 = vmul.f32 %v1971, %v2019
    %v2036 = vmul.f32 %v1972, %v2020
    %v2037 = vmul.f32 %v1973, %v2021
    %v2038 = vmul.f32 %v1974, %v2022
    %v2039 = vmul.f32 %v1975, %v2023
    %v2040 = vmul.f32 %v1976, %v2024
    %v2041 = vmul.f32 %v1977, %v2025
    %v2042 = vmul.f32 %v1978, %v2026
    %v2043 = vpack.c.bf16 %v2031, %v2027
    %v2044 = vpack.c.bf16 %v2032, %v2028
    %v2045 = vpack.c.bf16 %v2033, %v2029
    %v2046 = vpack.c.bf16 %v2034, %v2030
    %v2047 = vpack.c.bf16 %v2039, %v2035
    %v2048 = vpack.c.bf16 %v2040, %v2036
    %v2049 = vpack.c.bf16 %v2041, %v2037
    %v2050 = vpack.c.bf16 %v2042, %v2038
    %v2051 = vld [vmem:[#allocation11] sm:$0xf]
    %v2052 = vld [vmem:[#allocation11 + $0x4] sm:$0xf]
    %v2053 = vld [vmem:[#allocation11 + $0x8] sm:$0xf]
    %v2054 = vld [vmem:[#allocation11 + $0xc] sm:$0xf]
    %v2055 = vld [vmem:[#allocation11 + $0x10] sm:$0xf]
    %v2056 = vld [vmem:[#allocation11 + $0x14] sm:$0xf]
    %v2057 = vld [vmem:[#allocation11 + $0x18] sm:$0xf]
    %v2058 = vld [vmem:[#allocation11 + $0x1c] sm:$0xf]
    %v2059 = vld [vmem:[#allocation11 + $0x20] sm:$0xf]
    %v2060 = vld [vmem:[#allocation11 + $0x24] sm:$0xf]
    %v2061 = vld [vmem:[#allocation11 + $0x28] sm:$0xf]
    %v2062 = vld [vmem:[#allocation11 + $0x2c] sm:$0xf]
    %v2063 = vld [vmem:[#allocation11 + $0x30] sm:$0xf]
    %v2064 = vld [vmem:[#allocation11 + $0x34] sm:$0xf]
    %v2065 = vld [vmem:[#allocation11 + $0x38] sm:$0xf]
    %v2066 = vld [vmem:[#allocation11 + $0x3c] sm:$0xf]
    %v2067 = vld [vmem:[#allocation11 + $0x40] sm:$0xf]
    %v2068 = vld [vmem:[#allocation11 + $0x44] sm:$0xf]
    %v2069 = vld [vmem:[#allocation11 + $0x48] sm:$0xf]
    %v2070 = vld [vmem:[#allocation11 + $0x4c] sm:$0xf]
    %v2071 = vld [vmem:[#allocation11 + $0x50] sm:$0xf]
    %v2072 = vld [vmem:[#allocation11 + $0x54] sm:$0xf]
    %v2073 = vld [vmem:[#allocation11 + $0x58] sm:$0xf]
    %v2074 = vld [vmem:[#allocation11 + $0x5c] sm:$0xf]
    %v2075 = vld [vmem:[#allocation11 + $0x60] sm:$0xf]
    %v2076 = vld [vmem:[#allocation11 + $0x64] sm:$0xf]
    %v2077 = vld [vmem:[#allocation11 + $0x68] sm:$0xf]
    %v2078 = vld [vmem:[#allocation11 + $0x6c] sm:$0xf]
    %v2079 = vld [vmem:[#allocation11 + $0x70] sm:$0xf]
    %v2080 = vld [vmem:[#allocation11 + $0x74] sm:$0xf]
    %v2081 = vld [vmem:[#allocation11 + $0x78] sm:$0xf]
    %v2082 = vld [vmem:[#allocation11 + $0x7c] sm:$0xf]
    %v2083 = vld [vmem:[#allocation11 + $0x80] sm:$0xf]
    %v2084 = vld [vmem:[#allocation11 + $0x84] sm:$0xf]
    %v2085 = vld [vmem:[#allocation11 + $0x88] sm:$0xf]
    %v2086 = vld [vmem:[#allocation11 + $0x8c] sm:$0xf]
    %v2087 = vld [vmem:[#allocation11 + $0x90] sm:$0xf]
    %v2088 = vld [vmem:[#allocation11 + $0x94] sm:$0xf]
    %v2089 = vld [vmem:[#allocation11 + $0x98] sm:$0xf]
    %v2090 = vld [vmem:[#allocation11 + $0x9c] sm:$0xf]
    %v2091 = vld [vmem:[#allocation11 + $0xa0] sm:$0xf]
    %v2092 = vld [vmem:[#allocation11 + $0xa4] sm:$0xf]
    %v2093 = vld [vmem:[#allocation11 + $0xa8] sm:$0xf]
    %v2094 = vld [vmem:[#allocation11 + $0xac] sm:$0xf]
    %v2095 = vld [vmem:[#allocation11 + $0xb0] sm:$0xf]
    %v2096 = vld [vmem:[#allocation11 + $0xb4] sm:$0xf]
    %v2097 = vld [vmem:[#allocation11 + $0xb8] sm:$0xf]
    %v2098 = vld [vmem:[#allocation11 + $0xbc] sm:$0xf]
    %v2099 = vld [vmem:[#allocation11 + $0xc0] sm:$0xf]
    %v2100 = vld [vmem:[#allocation11 + $0xc4] sm:$0xf]
    %v2101 = vld [vmem:[#allocation11 + $0xc8] sm:$0xf]
    %v2102 = vld [vmem:[#allocation11 + $0xcc] sm:$0xf]
    %v2103 = vld [vmem:[#allocation11 + $0xd0] sm:$0xf]
    %v2104 = vld [vmem:[#allocation11 + $0xd4] sm:$0xf]
    %v2105 = vld [vmem:[#allocation11 + $0xd8] sm:$0xf]
    %v2106 = vld [vmem:[#allocation11 + $0xdc] sm:$0xf]
    %v2107 = vld [vmem:[#allocation11 + $0xe0] sm:$0xf]
    %v2108 = vld [vmem:[#allocation11 + $0xe4] sm:$0xf]
    %v2109 = vld [vmem:[#allocation11 + $0xe8] sm:$0xf]
    %v2110 = vld [vmem:[#allocation11 + $0xec] sm:$0xf]
    %v2111 = vld [vmem:[#allocation11 + $0xf0] sm:$0xf]
    %v2112 = vld [vmem:[#allocation11 + $0xf4] sm:$0xf]
    %v2113 = vld [vmem:[#allocation11 + $0xf8] sm:$0xf]
    %v2114 = vld [vmem:[#allocation11 + $0xfc] sm:$0xf]
    %v2115 = vld [vmem:[%s13] sm:$0x1]
    %v2117 = vlaneseq
    %v2118 = vshrl.u32 %v2117, 7
    %v2119 = vsub.s32 0, %v2118
    %v2120 = vrot.slane %v2115, %v2119
    %v2186 = vunpack.c.l.b16 %v2051
    %v2187 = vunpack.c.l.b16 %v2052
    %v2188 = vunpack.c.l.b16 %v2053
    %v2189 = vunpack.c.l.b16 %v2054
    %v2190 = vunpack.c.l.b16 %v2055
    %v2191 = vunpack.c.l.b16 %v2056
    %v2192 = vunpack.c.l.b16 %v2057
    %v2193 = vunpack.c.l.b16 %v2058
    %v2194 = vunpack.c.l.b16 %v2059
    %v2195 = vunpack.c.l.b16 %v2060
    %v2196 = vunpack.c.l.b16 %v2061
    %v2197 = vunpack.c.l.b16 %v2062
    %v2198 = vunpack.c.l.b16 %v2063
    %v2199 = vunpack.c.l.b16 %v2064
    %v2200 = vunpack.c.l.b16 %v2065
    %v2201 = vunpack.c.l.b16 %v2066
    %v2202 = vunpack.c.l.b16 %v2067
    %v2203 = vunpack.c.l.b16 %v2068
    %v2204 = vunpack.c.l.b16 %v2069
    %v2205 = vunpack.c.l.b16 %v2070
    %v2206 = vunpack.c.l.b16 %v2071
    %v2207 = vunpack.c.l.b16 %v2072
    %v2208 = vunpack.c.l.b16 %v2073
    %v2209 = vunpack.c.l.b16 %v2074
    %v2210 = vunpack.c.l.b16 %v2075
    %v2211 = vunpack.c.l.b16 %v2076
    %v2212 = vunpack.c.l.b16 %v2077
    %v2213 = vunpack.c.l.b16 %v2078
    %v2214 = vunpack.c.l.b16 %v2079
    %v2215 = vunpack.c.l.b16 %v2080
    %v2216 = vunpack.c.l.b16 %v2081
    %v2217 = vunpack.c.l.b16 %v2082
    %v2218 = vunpack.c.l.b16 %v2083
    %v2219 = vunpack.c.l.b16 %v2084
    %v2220 = vunpack.c.l.b16 %v2085
    %v2221 = vunpack.c.l.b16 %v2086
    %v2222 = vunpack.c.l.b16 %v2087
    %v2223 = vunpack.c.l.b16 %v2088
    %v2224 = vunpack.c.l.b16 %v2089
    %v2225 = vunpack.c.l.b16 %v2090
    %v2226 = vunpack.c.l.b16 %v2091
    %v2227 = vunpack.c.l.b16 %v2092
    %v2228 = vunpack.c.l.b16 %v2093
    %v2229 = vunpack.c.l.b16 %v2094
    %v2230 = vunpack.c.l.b16 %v2095
    %v2231 = vunpack.c.l.b16 %v2096
    %v2232 = vunpack.c.l.b16 %v2097
    %v2233 = vunpack.c.l.b16 %v2098
    %v2234 = vunpack.c.l.b16 %v2099
    %v2235 = vunpack.c.l.b16 %v2100
    %v2236 = vunpack.c.l.b16 %v2101
    %v2237 = vunpack.c.l.b16 %v2102
    %v2238 = vunpack.c.l.b16 %v2103
    %v2239 = vunpack.c.l.b16 %v2104
    %v2240 = vunpack.c.l.b16 %v2105
    %v2241 = vunpack.c.l.b16 %v2106
    %v2242 = vunpack.c.l.b16 %v2107
    %v2243 = vunpack.c.l.b16 %v2108
    %v2244 = vunpack.c.l.b16 %v2109
    %v2245 = vunpack.c.l.b16 %v2110
    %v2246 = vunpack.c.l.b16 %v2111
    %v2247 = vunpack.c.l.b16 %v2112
    %v2248 = vunpack.c.l.b16 %v2113
    %v2249 = vunpack.c.l.b16 %v2114
    %v2250 = vpack.c.b16 %v2187, %v2186
    %v2251 = vpack.c.b16 %v2189, %v2188
    %v2252 = vpack.c.b16 %v2191, %v2190
    %v2253 = vpack.c.b16 %v2193, %v2192
    %v2254 = vpack.c.b16 %v2195, %v2194
    %v2255 = vpack.c.b16 %v2197, %v2196
    %v2256 = vpack.c.b16 %v2199, %v2198
    %v2257 = vpack.c.b16 %v2201, %v2200
    %v2258 = vpack.c.b16 %v2203, %v2202
    %v2259 = vpack.c.b16 %v2205, %v2204
    %v2260 = vpack.c.b16 %v2207, %v2206
    %v2261 = vpack.c.b16 %v2209, %v2208
    %v2262 = vpack.c.b16 %v2211, %v2210
    %v2263 = vpack.c.b16 %v2213, %v2212
    %v2264 = vpack.c.b16 %v2215, %v2214
    %v2265 = vpack.c.b16 %v2217, %v2216
    %v2266 = vpack.c.b16 %v2219, %v2218
    %v2267 = vpack.c.b16 %v2221, %v2220
    %v2268 = vpack.c.b16 %v2223, %v2222
    %v2269 = vpack.c.b16 %v2225, %v2224
    %v2270 = vpack.c.b16 %v2227, %v2226
    %v2271 = vpack.c.b16 %v2229, %v2228
    %v2272 = vpack.c.b16 %v2231, %v2230
    %v2273 = vpack.c.b16 %v2233, %v2232
    %v2274 = vpack.c.b16 %v2235, %v2234
    %v2275 = vpack.c.b16 %v2237, %v2236
    %v2276 = vpack.c.b16 %v2239, %v2238
    %v2277 = vpack.c.b16 %v2241, %v2240
    %v2278 = vpack.c.b16 %v2243, %v2242
    %v2279 = vpack.c.b16 %v2245, %v2244
    %v2280 = vpack.c.b16 %v2247, %v2246
    %v2281 = vpack.c.b16 %v2249, %v2248
    %2314 = vmatprep.subr.bf16.mxu0 0
    %2315 = vmatpush1.bf16.msra.mxu0 %v2257
    %2316 = vmatprep.subr.bf16.mxu0 0
    %2317 = vmatpush1.bf16.msra.mxu0 %v2256
    %2318 = vmatprep.subr.bf16.mxu0 0
    %2319 = vmatpush1.bf16.msra.mxu0 %v2255
    %2320 = vmatprep.subr.bf16.mxu0 0
    %2321 = vmatpush1.bf16.msra.mxu0 %v2254
    %2322 = vmatprep.subr.bf16.mxu0 0
    %2323 = vmatpush1.bf16.msra.mxu0 %v2253
    %2324 = vmatprep.subr.bf16.mxu0 0
    %2325 = vmatpush1.bf16.msra.mxu0 %v2252
    %2326 = vmatprep.subr.bf16.mxu0 0
    %2327 = vmatpush1.bf16.msra.mxu0 %v2251
    %2328 = vmatprep.subr.bf16.mxu0 0
    %2329 = vmatpush1.bf16.msra.mxu0 %v2250
    %2330 = vmatprep.subr.bf16.mxu0 0
    %2331 = vmatpush2.bf16.msra.mxu0 %v2265
    %2332 = vmatprep.subr.bf16.mxu0 0
    %2333 = vmatpush2.bf16.msra.mxu0 %v2264
    %2334 = vmatprep.subr.bf16.mxu0 0
    %2335 = vmatpush2.bf16.msra.mxu0 %v2263
    %2336 = vmatprep.subr.bf16.mxu0 0
    %2337 = vmatpush2.bf16.msra.mxu0 %v2262
    %2338 = vmatprep.subr.bf16.mxu0 0
    %2339 = vmatpush2.bf16.msra.mxu0 %v2261
    %2340 = vmatprep.subr.bf16.mxu0 0
    %2341 = vmatpush2.bf16.msra.mxu0 %v2260
    %2342 = vmatprep.subr.bf16.mxu0 0
    %2343 = vmatpush2.bf16.msra.mxu0 %v2259
    %2344 = vmatprep.subr.bf16.mxu0 0
    %2345 = vmatpush2.bf16.msra.mxu0 %v2258
    %2346 = vmatprep.mubr.bf16.mxu0 %v2044
    %2347 = vmatmul.mubr.bf16.gmra.mxu0 %v2043
    %v2348 = vpop.f32.mrf.mxu0
    %v2349 = vadd.f32 %v2120, %v2348
    %v2350 = vpop.f32.mrf.mxu0
    %v2351 = vpop.f32.mrf.mxu0
    %v2352 = vadd.f32 %v2120, %v2351
    %v2353 = vpop.f32.mrf.mxu0
    %2354 = vmatprep.mubr.bf16.mxu0 %v2048
    %2355 = vmatmul.mubr.bf16.gmra.mxu0 %v2047
    %v2356 = vpop.f32.mrf.mxu0
    %v2357 = vadd.f32 %v2120, %v2356
    %v2358 = vpop.f32.mrf.mxu0
    %v2359 = vpop.f32.mrf.mxu0
    %v2360 = vadd.f32 %v2120, %v2359
    %v2361 = vpop.f32.mrf.mxu0
    %2362 = vdwg.mxu0
    %2363 = vmatprep.subr.bf16.mxu0 0
    %2364 = vmatpush1.bf16.msra.mxu0 %v2273
    %2365 = vmatprep.subr.bf16.mxu0 0
    %2366 = vmatpush1.bf16.msra.mxu0 %v2272
    %2367 = vmatprep.subr.bf16.mxu0 0
    %2368 = vmatpush1.bf16.msra.mxu0 %v2271
    %2369 = vmatprep.subr.bf16.mxu0 0
    %2370 = vmatpush1.bf16.msra.mxu0 %v2270
    %2371 = vmatprep.subr.bf16.mxu0 0
    %2372 = vmatpush1.bf16.msra.mxu0 %v2269
    %2373 = vmatprep.subr.bf16.mxu0 0
    %2374 = vmatpush1.bf16.msra.mxu0 %v2268
    %2375 = vmatprep.subr.bf16.mxu0 0
    %2376 = vmatpush1.bf16.msra.mxu0 %v2267
    %2377 = vmatprep.subr.bf16.mxu0 0
    %2378 = vmatpush1.bf16.msra.mxu0 %v2266
    %2379 = vmatprep.subr.bf16.mxu0 0
    %2380 = vmatpush2.bf16.msra.mxu0 %v2281
    %2381 = vmatprep.subr.bf16.mxu0 0
    %2382 = vmatpush2.bf16.msra.mxu0 %v2280
    %2383 = vmatprep.subr.bf16.mxu0 0
    %2384 = vmatpush2.bf16.msra.mxu0 %v2279
    %2385 = vmatprep.subr.bf16.mxu0 0
    %2386 = vmatpush2.bf16.msra.mxu0 %v2278
    %2387 = vmatprep.subr.bf16.mxu0 0
    %2388 = vmatpush2.bf16.msra.mxu0 %v2277
    %2389 = vmatprep.subr.bf16.mxu0 0
    %2390 = vmatpush2.bf16.msra.mxu0 %v2276
    %2391 = vmatprep.subr.bf16.mxu0 0
    %2392 = vmatpush2.bf16.msra.mxu0 %v2275
    %2393 = vmatprep.subr.bf16.mxu0 0
    %2394 = vmatpush2.bf16.msra.mxu0 %v2274
    %2395 = vmatprep.mubr.bf16.mxu0 %v2046
    %2396 = vmatmul.mubr.bf16.gmra.mxu0 %v2045
    %v2397 = vpop.f32.mrf.mxu0
    %v2398 = vadd.f32 %v2349, %v2397
    %v2399 = vpop.f32.mrf.mxu0
    %v2400 = vpop.f32.mrf.mxu0
    %v2401 = vadd.f32 %v2352, %v2400
    %v2402 = vpop.f32.mrf.mxu0
    %2403 = vmatprep.mubr.bf16.mxu0 %v2050
    %2404 = vmatmul.mubr.bf16.gmra.mxu0 %v2049
    %v2405 = vpop.f32.mrf.mxu0
    %v2406 = vadd.f32 %v2357, %v2405
    %v2407 = vpop.f32.mrf.mxu0
    %v2408 = vpop.f32.mrf.mxu0
    %v2409 = vadd.f32 %v2360, %v2408
    %v2410 = vpop.f32.mrf.mxu0
    %2411 = vdwg.mxu0
    %v2412 = vadd.f32 %v2398, %v1637
    %v2413 = vadd.f32 %v2401, %v1638
    %v2414 = vadd.f32 %v2406, %v1639
    %v2415 = vadd.f32 %v2409, %v1640
    %2416 = vadd.xlane.f32.xlu0 %v2412
    %v2417 = vpop.xlane.xlu0 %2416
    %2418 = vadd.xlane.f32.xlu0 %v2413
    %v2419 = vpop.xlane.xlu0 %2418
    %2420 = vadd.xlane.f32.xlu0 %v2414
    %v2421 = vpop.xlane.xlu0 %2420
    %2422 = vadd.xlane.f32.xlu0 %v2415
    %v2423 = vpop.xlane.xlu0 %2422
    %v2424 = vmul.f32 %v2417, %v1582
    %v2425 = vmul.f32 %v2419, %v1582
    %v2426 = vmul.f32 %v2421, %v1582
    %v2427 = vmul.f32 %v2423, %v1582
    %v2428 = vsub.f32 %v2412, %v2424
    %v2429 = vsub.f32 %v2413, %v2425
    %v2430 = vsub.f32 %v2414, %v2426
    %v2431 = vsub.f32 %v2415, %v2427
    %v2432 = vmul.f32 %v2428, %v2428
    %v2433 = vmul.f32 %v2429, %v2429
    %v2434 = vmul.f32 %v2430, %v2430
    %v2435 = vmul.f32 %v2431, %v2431
    %2436 = vadd.xlane.f32.xlu0 %v2432
    %v2437 = vpop.xlane.xlu0 %2436
    %2438 = vadd.xlane.f32.xlu0 %v2433
    %v2439 = vpop.xlane.xlu0 %2438
    %2440 = vadd.xlane.f32.xlu0 %v2434
    %v2441 = vpop.xlane.xlu0 %2440
    %2442 = vadd.xlane.f32.xlu0 %v2435
    %v2443 = vpop.xlane.xlu0 %2442
    %v2444 = vmul.f32 %v2437, %v1582
    %v2445 = vmul.f32 %v2439, %v1582
    %v2446 = vmul.f32 %v2441, %v1582
    %v2447 = vmul.f32 %v2443, %v1582
    %v2448 = vadd.f32 %v2444, 1e-05
    %v2449 = vadd.f32 %v2445, 1e-05
    %v2450 = vadd.f32 %v2446, 1e-05
    %v2451 = vadd.f32 %v2447, 1e-05
    %v2452 = vrsqrt.pop %v2448
    %v2453 = vrsqrt.pop %v2449
    %v2454 = vrsqrt.pop %v2450
    %v2455 = vrsqrt.pop %v2451
    %v2456 = vmul.f32 %v2428, %v2452
    %v2457 = vmul.f32 %v2429, %v2453
    %v2458 = vmul.f32 %v2430, %v2454
    %v2459 = vmul.f32 %v2431, %v2455
    %v2460 = vld [vmem:[%s8] sm:$0x1]
    %v2462 = vlaneseq
    %v2463 = vshrl.u32 %v2462, 7
    %v2464 = vsub.s32 0, %v2463
    %v2465 = vrot.slane %v2460, %v2464
    %v2467 = vmul.f32 %v2456, %v2465
    %v2468 = vmul.f32 %v2457, %v2465
    %v2469 = vmul.f32 %v2458, %v2465
    %v2470 = vmul.f32 %v2459, %v2465
    %v2471 = vld [vmem:[%s9] sm:$0x1]
    %v2473 = vlaneseq
    %v2474 = vshrl.u32 %v2473, 7
    %v2475 = vsub.s32 0, %v2474
    %v2476 = vrot.slane %v2471, %v2475
    %v2478 = vadd.f32 %v2467, %v2476
    %v2479 = vadd.f32 %v2468, %v2476
    %v2480 = vadd.f32 %v2469, %v2476
    %v2481 = vadd.f32 %v2470, %v2476
    %2482 = vst [vmem:[#allocation13] sm:$0xff] %v2478
    %2483 = vst [vmem:[#allocation13 + $0x8] sm:$0xff] %v2479
    %2484 = vst [vmem:[#allocation13 + $0x10] sm:$0xff] %v2480
    %2485 = vst [vmem:[#allocation13 + $0x18] sm:$0xff] %v2481
    // Predicated region
    $region82: #{tpu_custom_call.1} parent=1 // pred_check
      _
    $region83: #{tpu_custom_call.1} parent=1 // pred_check_branch
      %2487 = sbr.rel (0) target = $region85
    $region84: #{tpu_custom_call.1} parent=1 // pred_region
      %s2489 = ssub.s32 512, 512
      %2490 = vsyncadd [#allocation4], %s2489
      %s2491 = sshll.u32 [#allocation13], 4
      %s2492 = int_to_ptr.vmem [resolvable:$true] %s2491
      %2497 = dma.vmem_to_hbm [thread:$0]  %s2492, 512, %s14, [#allocation4], 128, 128, 8
    $region85: #{tpu_custom_call.1} parent=1 // pred_fallthru
      _
    // Predicated region
    $region86: #{tpu_custom_call.1} parent=1 // pred_check
      _
    $region87: #{tpu_custom_call.1} parent=1 // pred_check_branch
      %2499 = sbr.rel (0) target = $region89
    $region88: #{tpu_custom_call.1} parent=1 // pred_region
      %2500 = dma.done [#allocation4], 512
    $region89: #{tpu_custom_call.1} parent=1 // pred_fallthru
      _
    %2501 = vsyncpa [#allocation3], 1
    %2502 = vsyncpa [#allocation6], 1
    %2503 = vsyncpa [#allocation9], 1
    %2504 = vsyncpa [#allocation12], 1
    %2505 = vsyncpa [#allocation4], 1

</llo_original>
